<compile_context>
chip_gen: v6e
topology: v6e:2x2x1
jax: 0.10.0
libtpu: 0.0.40
codegen_flags: <defaults>
</compile_context>

<pallas_src>
import functools

import jax
import jax.numpy as jnp
from jax.experimental import pallas as pl
from jax.experimental.pallas import tpu as pltpu


# ---------------------------------------------------------------------------
# Wrapper-side helpers (pure JAX, run once outside the kernel).
# ---------------------------------------------------------------------------
def _fold_conv_weight(w, W):
    """(3,3,Ci,Co) HWIO conv weight -> (3, W*Ci, W*Co) per-ky banded matrices.

    Wf[ky, w_in*Ci + ci, w_out*Co + co] = w[ky, w_in - w_out + 1, ci, co]
    (zero outside the 3-tap band).  Multiplying a W-folded input row by Wf[ky]
    realizes the kx / width part of the 3x3 conv with 'SAME' zero padding in W
    baked into the band structure (edge taps simply vanish).
    """
    _, _, Ci, Co = w.shape
    w_in = jnp.arange(W)[:, None]          # (W, 1)
    w_out = jnp.arange(W)[None, :]         # (1, W)
    kx = w_in - w_out + 1                  # (W, W)
    valid = (kx >= 0) & (kx <= 2)
    kx_c = jnp.clip(kx, 0, 2)
    blocks = w[:, kx_c, :, :]              # (3, W, W, Ci, Co)
    blocks = blocks * valid[None, :, :, None, None].astype(w.dtype)
    # -> (ky, w_in, ci, w_out, co) -> (3, W*Ci, W*Co)
    return blocks.transpose(0, 1, 3, 2, 4).reshape(3, W * Ci, W * Co)


def _make_pool_select(W, Cout, dtype):
    """0/1 selection matrices for the W direction of the 2x2 max pool.

    sel[0] picks lanes (2*w')*Cout + c, sel[1] picks (2*w'+1)*Cout + c, so that
    down = max(ph @ sel[0], ph @ sel[1]) compacts W*Cout -> (W/2)*Cout lanes
    without any lane-dim reshape inside the kernel.
    """
    l = jnp.arange(W * Cout)[:, None]                       # input lane
    m = jnp.arange((W // 2) * Cout)[None, :]                # output lane
    wp, c = m // Cout, m % Cout
    even = (l == 2 * wp * Cout + c).astype(dtype)
    odd = (l == (2 * wp + 1) * Cout + c).astype(dtype)
    return jnp.stack([even, odd], axis=0)                   # (2, W*Cout, (W/2)*Cout)


# ---------------------------------------------------------------------------
# Kernel: one batch tile (Bt images) per grid step.
# ---------------------------------------------------------------------------
def down_kernel(xf_ref, w1f_ref, b1f_ref, w2f_ref, b2f_ref, sel_ref,
                feat_ref, down_ref, *, negative_slope, H, W, Cout):
    Bt = xf_ref.shape[0]
    WCi = xf_ref.shape[-1]
    WCo = W * Cout
    ns = negative_slope
    mxu_dtype = w1f_ref.dtype

    def leaky(v):                       # exact LeakyReLU for any slope
        return jnp.where(v > 0, v, ns * v)

    # ---- conv1: 3 accumulating per-ky banded matmuls (K = W*Cin) ----------
    xall = xf_ref[...]                                          # (Bt, H+2, W*Cin) bf16
    acc1 = jnp.zeros((Bt * H, WCo), jnp.float32)
    for ky in range(3):                                         # static unroll
        lhs = xall[:, ky:ky + H, :].reshape(Bt * H, WCi)
        acc1 = acc1 + jnp.dot(lhs, w1f_ref[ky],
                              preferred_element_type=jnp.float32)
    feat1 = leaky(acc1 + b1f_ref[...])                          # f32 (Bt*H, W*Cout)

    # ---- zero-pad feat1 by one row in H (value-level, no scratch) ---------
    zrow = jnp.zeros((Bt, 1, WCo), mxu_dtype)
    f1p = jnp.concatenate(
        [zrow, feat1.reshape(Bt, H, WCo).astype(mxu_dtype), zrow], axis=1)

    # ---- conv2: 3 accumulating per-ky banded matmuls (K = W*Cout) ---------
    acc2 = jnp.zeros((Bt * H, WCo), jnp.float32)
    for ky in range(3):
        lhs = f1p[:, ky:ky + H, :].reshape(Bt * H, WCo)
        acc2 = acc2 + jnp.dot(lhs, w2f_ref[ky],
                              preferred_element_type=jnp.float32)
    feat2 = leaky(acc2 + b2f_ref[...])                          # f32 (Bt*H, W*Cout)

    feat_ref[...] = feat2.reshape(Bt, H, WCo).astype(feat_ref.dtype)

    # ---- 2x2 max pool, stride 2, fully in-register -------------------------
    # H direction: adjacent rows (same image, H even) -> sublane pair-max.
    ph = jnp.max(feat2.reshape(Bt * (H // 2), 2, WCo), axis=1)  # (Bt*H/2, W*Cout)
    # W direction: even/odd lane-group selection via two tiny MXU matmuls.
    phb = ph.astype(mxu_dtype)
    d_even = jnp.dot(phb, sel_ref[0], preferred_element_type=jnp.float32)
    d_odd = jnp.dot(phb, sel_ref[1], preferred_element_type=jnp.float32)
    down = jnp.maximum(d_even, d_odd)                           # (Bt*H/2, (W/2)*Cout)
    down_ref[...] = down.reshape(Bt, H // 2, (W // 2) * Cout).astype(down_ref.dtype)


# ---------------------------------------------------------------------------
# Wrapper: NCHW in / NCHW out (matches PyTorch), conv weights in HWIO.
# ---------------------------------------------------------------------------
def down_pallas(x_nchw, w1, b1, w2, b2, negative_slope=0.01,
                block_batch=8, mxu_dtype=jnp.bfloat16):
    B, Cin, H, W = x_nchw.shape
    Cout = w1.shape[-1]
    assert H % 2 == 0 and W % 2 == 0
    # Folded weights scale as (W*C)^2 — this formulation targets small W*C
    # where patch-assembly relayout (not the MXU) is the bottleneck.
    assert W * max(Cin, Cout) <= 4096, "fold-W formulation sized for small W*C"

    # >= 2 grid steps whenever possible (v7x has 2 TensorCores; the single
    # "parallel" grid axis shards across them and enables DMA/compute overlap).
    Bt = max(1, min(block_batch, B // 2 if B >= 2 else 1))
    B_pad = pl.cdiv(B, Bt) * Bt

    WCi, WCo = W * Cin, W * Cout
    WCo_d = (W // 2) * Cout
    out_dtype = x_nchw.dtype

    # NCHW -> W-folded (B, H, W*Cin); zero-pad H by 1 ('SAME'); pad batch.
    x = jnp.transpose(x_nchw, (0, 2, 3, 1)).reshape(B, H, WCi)
    xf = jnp.pad(x, ((0, B_pad - B), (1, 1), (0, 0))).astype(mxu_dtype)

    w1f = _fold_conv_weight(w1, W).astype(mxu_dtype)      # (3, W*Cin,  W*Cout)
    w2f = _fold_conv_weight(w2, W).astype(mxu_dtype)      # (3, W*Cout, W*Cout)
    b1f = jnp.tile(b1, W).reshape(1, WCo).astype(jnp.float32)
    b2f = jnp.tile(b2, W).reshape(1, WCo).astype(jnp.float32)
    sel = _make_pool_select(W, Cout, mxu_dtype)           # (2, W*Cout, (W/2)*Cout)

    # Explicit per-step VMEM budget (double-buffered blocks + resident consts),
    # clamped well under v7x's 64 MiB physical VMEM.
    bi = jnp.dtype(mxu_dtype).itemsize
    bo = jnp.dtype(out_dtype).itemsize
    est = (2 * Bt * (H + 2) * WCi * bi                    # x block (2 buffers)
           + 2 * Bt * H * WCo * bo                        # feat block
           + 2 * Bt * (H // 2) * WCo_d * bo               # down block
           + 2 * 3 * (WCi + WCo) * WCo * bi               # folded conv weights
           + 2 * 2 * WCo * WCo_d * bi                     # pool selectors
           + 2 * 2 * WCo * 4)                             # biases
    vmem_limit = int(min(48 * 2 ** 20, max(4 * est, 16 * 2 ** 20)))

    kernel = functools.partial(down_kernel, negative_slope=negative_slope,
                               H=H, W=W, Cout=Cout)

    feat_f, down_f = pl.pallas_call(
        kernel,
        out_shape=(
            jax.ShapeDtypeStruct((B_pad, H, WCo), out_dtype),
            jax.ShapeDtypeStruct((B_pad, H // 2, WCo_d), out_dtype),
        ),
        grid_spec=pltpu.PrefetchScalarGridSpec(
            num_scalar_prefetch=0,
            grid=(B_pad // Bt,),
            in_specs=[
                pl.BlockSpec((Bt, H + 2, WCi), lambda b: (b, 0, 0)),
                pl.BlockSpec((3, WCi, WCo),    lambda b: (0, 0, 0)),
                pl.BlockSpec((1, WCo),         lambda b: (0, 0)),
                pl.BlockSpec((3, WCo, WCo),    lambda b: (0, 0, 0)),
                pl.BlockSpec((1, WCo),         lambda b: (0, 0)),
                pl.BlockSpec((2, WCo, WCo_d),  lambda b: (0, 0, 0)),
            ],
            out_specs=[
                pl.BlockSpec((Bt, H, WCo),        lambda b: (b, 0, 0)),
                pl.BlockSpec((Bt, H // 2, WCo_d), lambda b: (b, 0, 0)),
            ],
        ),
        compiler_params=pltpu.CompilerParams(
            dimension_semantics=("parallel",),
            vmem_limit_bytes=vmem_limit,
        ),
    )(xf, w1f, b1f, w2f, b2f, sel)

    # Un-fold lane layout and drop batch padding; NHWC -> NCHW.
    feat = jnp.transpose(feat_f[:B].reshape(B, H, W, Cout), (0, 3, 1, 2))
    down = jnp.transpose(down_f[:B].reshape(B, H // 2, W // 2, Cout), (0, 3, 1, 2))
    return feat, down


# ---------------------------------------------------------------------------
# Pure-JAX reference (correctness check only).
# ---------------------------------------------------------------------------
def ref_down(x_nchw, w1, b1, w2, b2, negative_slope=0.01):
    dn = ('NCHW', 'HWIO', 'NCHW')
    y = jax.lax.conv_general_dilated(x_nchw, w1, (1, 1), 'SAME',
                                     dimension_numbers=dn,
                                     precision=jax.lax.Precision.HIGHEST)
    y = y + b1.reshape(1, -1, 1, 1)
    y = jnp.where(y > 0, y, negative_slope * y)
    y = jax.lax.conv_general_dilated(y, w2, (1, 1), 'SAME',
                                     dimension_numbers=dn,
                                     precision=jax.lax.Precision.HIGHEST)
    y = y + b2.reshape(1, -1, 1, 1)
    feat = jnp.where(y > 0, y, negative_slope * y)
    down = jax.lax.reduce_window(feat, -jnp.inf, jax.lax.max,
                                 (1, 1, 2, 2), (1, 1, 2, 2), 'VALID')
    return feat, down


if __name__ == "__main__":
    key = jax.random.PRNGKey(0)
    k1, k2, k3, k4, k5 = jax.random.split(key, 5)

    B, Cin, H, W = 2, 4, 16, 16
    Cout = 8

    # deterministic synthetic parameters (module __init__ shapes, HWIO layout)
    x = jax.random.normal(k1, (B, Cin, H, W), jnp.float32)
    w1 = jax.random.normal(k2, (3, 3, Cin, Cout), jnp.float32) * 0.1
    b1 = jax.random.normal(k3, (Cout,), jnp.float32) * 0.1
    w2 = jax.random.normal(k4, (3, 3, Cout, Cout), jnp.float32) * 0.1
    b2 = jax.random.normal(k5, (Cout,), jnp.float32) * 0.1

    feat, down = jax.jit(down_pallas)(x, w1, b1, w2, b2)
    jax.block_until_ready((feat, down))

    # sanity check against pure-JAX reference (bf16 MXU operands -> relaxed tol)
    feat_r, down_r = ref_down(x, w1, b1, w2, b2)
    assert feat.shape == (B, Cout, H, W)
    assert down.shape == (B, Cout, H // 2, W // 2)
    assert jnp.allclose(feat, feat_r, rtol=3e-2, atol=3e-2)
    assert jnp.allclose(down, down_r, rtol=3e-2, atol=3e-2)

    print("KERNEL_OK")
</pallas_src>

<mosaic_0001>
module attributes {stable_mosaic.version = 11 : i64} {
  func.func @down_kernel(%arg0: i32, %arg1: memref<1x18x64xbf16, #tpu.memory_space<vmem>>, %arg2: memref<3x64x128xbf16, #tpu.memory_space<vmem>>, %arg3: memref<1x128xf32, #tpu.memory_space<vmem>>, %arg4: memref<3x128x128xbf16, #tpu.memory_space<vmem>>, %arg5: memref<1x128xf32, #tpu.memory_space<vmem>>, %arg6: memref<2x128x64xbf16, #tpu.memory_space<vmem>>, %arg7: memref<1x16x128xf32, #tpu.memory_space<vmem>>, %arg8: memref<1x8x64xf32, #tpu.memory_space<vmem>>) attributes {dimension_semantics = [#tpu.dimension_semantics<parallel>], iteration_bounds = array<i64: 2>, scalar_prefetch = 0 : i64, scratch_operands = 0 : i64, tpu.core_type = #tpu.core_type<tc>, window_params = [{transform_indices = @transform_0, window_bounds = array<i64: 1, 18, 64>}, {pipeline_mode = #tpu.pipeline_mode<synchronous>, transform_indices = @transform_1, window_bounds = array<i64: 3, 64, 128>}, {pipeline_mode = #tpu.pipeline_mode<synchronous>, transform_indices = @transform_2, window_bounds = array<i64: 1, 128>}, {pipeline_mode = #tpu.pipeline_mode<synchronous>, transform_indices = @transform_3, window_bounds = array<i64: 3, 128, 128>}, {pipeline_mode = #tpu.pipeline_mode<synchronous>, transform_indices = @transform_4, window_bounds = array<i64: 1, 128>}, {pipeline_mode = #tpu.pipeline_mode<synchronous>, transform_indices = @transform_5, window_bounds = array<i64: 2, 128, 64>}, {transform_indices = @transform_6, window_bounds = array<i64: 1, 16, 128>}, {transform_indices = @transform_7, window_bounds = array<i64: 1, 8, 64>}]} {
    %c0 = arith.constant 0 : index
    %c0_0 = arith.constant 0 : index
    %c0_1 = arith.constant 0 : index
    %0 = vector.load %arg1[%c0, %c0_0, %c0_1] : memref<1x18x64xbf16, #tpu.memory_space<vmem>>, vector<1x18x64xbf16>
    %cst = arith.constant 0.000000e+00 : f32
    %1 = vector.broadcast %cst : f32 to vector<16x128xf32>
    %2 = vector.extract_strided_slice %0 {offsets = [0, 0, 0], sizes = [1, 16, 64], strides = [1, 1, 1]} : vector<1x18x64xbf16> to vector<1x16x64xbf16>
    %3 = vector.shape_cast %2 : vector<1x16x64xbf16> to vector<16x64xbf16>
    %c0_2 = arith.constant 0 : index
    %c0_3 = arith.constant 0 : index
    %c0_4 = arith.constant 0 : index
    %4 = vector.load %arg2[%c0_2, %c0_3, %c0_4] : memref<3x64x128xbf16, #tpu.memory_space<vmem>>, vector<1x64x128xbf16>
    %5 = vector.shape_cast %4 : vector<1x64x128xbf16> to vector<64x128xbf16>
    %cst_5 = arith.constant dense<0.000000e+00> : vector<16x128xf32>
    %6 = tpu.matmul %3, %5, %cst_5 {dimension_numbers = #tpu.dot_dimension_numbers<[1], [0], [0], [1], [0, 0, 1, 1], [], []>} : vector<16x64xbf16>, vector<64x128xbf16>, vector<16x128xf32> -> vector<16x128xf32>
    %7 = arith.addf %1, %6 : vector<16x128xf32>
    %8 = vector.extract_strided_slice %0 {offsets = [0, 1, 0], sizes = [1, 16, 64], strides = [1, 1, 1]} : vector<1x18x64xbf16> to vector<1x16x64xbf16>
    %9 = vector.shape_cast %8 : vector<1x16x64xbf16> to vector<16x64xbf16>
    %c1 = arith.constant 1 : index
    %c0_6 = arith.constant 0 : index
    %c0_7 = arith.constant 0 : index
    %10 = vector.load %arg2[%c1, %c0_6, %c0_7] : memref<3x64x128xbf16, #tpu.memory_space<vmem>>, vector<1x64x128xbf16>
    %11 = vector.shape_cast %10 : vector<1x64x128xbf16> to vector<64x128xbf16>
    %cst_8 = arith.constant dense<0.000000e+00> : vector<16x128xf32>
    %12 = tpu.matmul %9, %11, %cst_8 {dimension_numbers = #tpu.dot_dimension_numbers<[1], [0], [0], [1], [0, 0, 1, 1], [], []>} : vector<16x64xbf16>, vector<64x128xbf16>, vector<16x128xf32> -> vector<16x128xf32>
    %13 = arith.addf %7, %12 : vector<16x128xf32>
    %14 = vector.extract_strided_slice %0 {offsets = [0, 2, 0], sizes = [1, 16, 64], strides = [1, 1, 1]} : vector<1x18x64xbf16> to vector<1x16x64xbf16>
    %15 = vector.shape_cast %14 : vector<1x16x64xbf16> to vector<16x64xbf16>
    %c2 = arith.constant 2 : index
    %c0_9 = arith.constant 0 : index
    %c0_10 = arith.constant 0 : index
    %16 = vector.load %arg2[%c2, %c0_9, %c0_10] : memref<3x64x128xbf16, #tpu.memory_space<vmem>>, vector<1x64x128xbf16>
    %17 = vector.shape_cast %16 : vector<1x64x128xbf16> to vector<64x128xbf16>
    %cst_11 = arith.constant dense<0.000000e+00> : vector<16x128xf32>
    %18 = tpu.matmul %15, %17, %cst_11 {dimension_numbers = #tpu.dot_dimension_numbers<[1], [0], [0], [1], [0, 0, 1, 1], [], []>} : vector<16x64xbf16>, vector<64x128xbf16>, vector<16x128xf32> -> vector<16x128xf32>
    %19 = arith.addf %13, %18 : vector<16x128xf32>
    %c0_12 = arith.constant 0 : index
    %c0_13 = arith.constant 0 : index
    %20 = vector.load %arg3[%c0_12, %c0_13] : memref<1x128xf32, #tpu.memory_space<vmem>>, vector<1x128xf32>
    %21 = vector.broadcast %20 : vector<1x128xf32> to vector<16x128xf32>
    %22 = arith.addf %19, %21 : vector<16x128xf32>
    %cst_14 = arith.constant 0.000000e+00 : f32
    %23 = vector.broadcast %cst_14 : f32 to vector<16x128xf32>
    %24 = arith.cmpf ogt, %22, %23 : vector<16x128xf32>
    %cst_15 = arith.constant 0.00999999977 : f32
    %25 = vector.broadcast %cst_15 : f32 to vector<16x128xf32>
    %26 = arith.mulf %25, %22 : vector<16x128xf32>
    %27 = arith.select %24, %22, %26 : vector<16x128xi1>, vector<16x128xf32>
    %cst_16 = arith.constant 0.000000e+00 : bf16
    %28 = vector.broadcast %cst_16 : bf16 to vector<1x1x128xbf16>
    %29 = vector.shape_cast %27 : vector<16x128xf32> to vector<1x16x128xf32>
    %30 = arith.truncf %29 : vector<1x16x128xf32> to vector<1x16x128xbf16>
    %31 = tpu.concatenate %28, %30, %28 in 1 : vector<1x1x128xbf16>, vector<1x16x128xbf16>, vector<1x1x128xbf16> -> vector<1x18x128xbf16>
    %cst_17 = arith.constant 0.000000e+00 : f32
    %32 = vector.broadcast %cst_17 : f32 to vector<16x128xf32>
    %33 = vector.extract_strided_slice %31 {offsets = [0, 0, 0], sizes = [1, 16, 128], strides = [1, 1, 1]} : vector<1x18x128xbf16> to vector<1x16x128xbf16>
    %34 = vector.shape_cast %33 : vector<1x16x128xbf16> to vector<16x128xbf16>
    %c0_18 = arith.constant 0 : index
    %c0_19 = arith.constant 0 : index
    %c0_20 = arith.constant 0 : index
    %35 = vector.load %arg4[%c0_18, %c0_19, %c0_20] : memref<3x128x128xbf16, #tpu.memory_space<vmem>>, vector<1x128x128xbf16>
    %36 = vector.shape_cast %35 : vector<1x128x128xbf16> to vector<128x128xbf16>
    %cst_21 = arith.constant dense<0.000000e+00> : vector<16x128xf32>
    %37 = tpu.matmul %34, %36, %cst_21 {dimension_numbers = #tpu.dot_dimension_numbers<[1], [0], [0], [1], [0, 0, 1, 1], [], []>} : vector<16x128xbf16>, vector<128x128xbf16>, vector<16x128xf32> -> vector<16x128xf32>
    %38 = arith.addf %32, %37 : vector<16x128xf32>
    %39 = vector.extract_strided_slice %31 {offsets = [0, 1, 0], sizes = [1, 16, 128], strides = [1, 1, 1]} : vector<1x18x128xbf16> to vector<1x16x128xbf16>
    %40 = vector.shape_cast %39 : vector<1x16x128xbf16> to vector<16x128xbf16>
    %c1_22 = arith.constant 1 : index
    %c0_23 = arith.constant 0 : index
    %c0_24 = arith.constant 0 : index
    %41 = vector.load %arg4[%c1_22, %c0_23, %c0_24] : memref<3x128x128xbf16, #tpu.memory_space<vmem>>, vector<1x128x128xbf16>
    %42 = vector.shape_cast %41 : vector<1x128x128xbf16> to vector<128x128xbf16>
    %cst_25 = arith.constant dense<0.000000e+00> : vector<16x128xf32>
    %43 = tpu.matmul %40, %42, %cst_25 {dimension_numbers = #tpu.dot_dimension_numbers<[1], [0], [0], [1], [0, 0, 1, 1], [], []>} : vector<16x128xbf16>, vector<128x128xbf16>, vector<16x128xf32> -> vector<16x128xf32>
    %44 = arith.addf %38, %43 : vector<16x128xf32>
    %45 = vector.extract_strided_slice %31 {offsets = [0, 2, 0], sizes = [1, 16, 128], strides = [1, 1, 1]} : vector<1x18x128xbf16> to vector<1x16x128xbf16>
    %46 = vector.shape_cast %45 : vector<1x16x128xbf16> to vector<16x128xbf16>
    %c2_26 = arith.constant 2 : index
    %c0_27 = arith.constant 0 : index
    %c0_28 = arith.constant 0 : index
    %47 = vector.load %arg4[%c2_26, %c0_27, %c0_28] : memref<3x128x128xbf16, #tpu.memory_space<vmem>>, vector<1x128x128xbf16>
    %48 = vector.shape_cast %47 : vector<1x128x128xbf16> to vector<128x128xbf16>
    %cst_29 = arith.constant dense<0.000000e+00> : vector<16x128xf32>
    %49 = tpu.matmul %46, %48, %cst_29 {dimension_numbers = #tpu.dot_dimension_numbers<[1], [0], [0], [1], [0, 0, 1, 1], [], []>} : vector<16x128xbf16>, vector<128x128xbf16>, vector<16x128xf32> -> vector<16x128xf32>
    %50 = arith.addf %44, %49 : vector<16x128xf32>
    %c0_30 = arith.constant 0 : index
    %c0_31 = arith.constant 0 : index
    %51 = vector.load %arg5[%c0_30, %c0_31] : memref<1x128xf32, #tpu.memory_space<vmem>>, vector<1x128xf32>
    %52 = vector.broadcast %51 : vector<1x128xf32> to vector<16x128xf32>
    %53 = arith.addf %50, %52 : vector<16x128xf32>
    %cst_32 = arith.constant 0.000000e+00 : f32
    %54 = vector.broadcast %cst_32 : f32 to vector<16x128xf32>
    %55 = arith.cmpf ogt, %53, %54 : vector<16x128xf32>
    %cst_33 = arith.constant 0.00999999977 : f32
    %56 = vector.broadcast %cst_33 : f32 to vector<16x128xf32>
    %57 = arith.mulf %56, %53 : vector<16x128xf32>
    %58 = arith.select %55, %53, %57 : vector<16x128xi1>, vector<16x128xf32>
    %59 = vector.shape_cast %58 : vector<16x128xf32> to vector<1x16x128xf32>
    %c0_34 = arith.constant 0 : index
    %c0_35 = arith.constant 0 : index
    %c0_36 = arith.constant 0 : index
    %60 = vector.load %arg7[%c0_34, %c0_35, %c0_36] : memref<1x16x128xf32, #tpu.memory_space<vmem>>, vector<1x16x128xf32>
    tpu.vector_store %arg7[%c0_34, %c0_35, %c0_36], %59 {strides = array<i32>} : memref<1x16x128xf32, #tpu.memory_space<vmem>>, vector<1x16x128xf32>,
    %61 = vector.shape_cast %58 : vector<16x128xf32> to vector<8x2x128xf32>
    %cst_37 = arith.constant dense<0xFF800000> : vector<8x128xf32>
    %62 = vector.multi_reduction <maximumf>, %61, %cst_37 [1] : vector<8x2x128xf32> to vector<8x128xf32>
    %63 = arith.truncf %62 : vector<8x128xf32> to vector<8x128xbf16>
    %c0_38 = arith.constant 0 : index
    %c0_39 = arith.constant 0 : index
    %c0_40 = arith.constant 0 : index
    %64 = vector.load %arg6[%c0_38, %c0_39, %c0_40] : memref<2x128x64xbf16, #tpu.memory_space<vmem>>, vector<1x128x64xbf16>
    %65 = vector.shape_cast %64 : vector<1x128x64xbf16> to vector<128x64xbf16>
    %cst_41 = arith.constant dense<0.000000e+00> : vector<8x64xf32>
    %66 = tpu.matmul %63, %65, %cst_41 {dimension_numbers = #tpu.dot_dimension_numbers<[1], [0], [0], [1], [0, 0, 1, 1], [], []>} : vector<8x128xbf16>, vector<128x64xbf16>, vector<8x64xf32> -> vector<8x64xf32>
    %c1_42 = arith.constant 1 : index
    %c0_43 = arith.constant 0 : index
    %c0_44 = arith.constant 0 : index
    %67 = vector.load %arg6[%c1_42, %c0_43, %c0_44] : memref<2x128x64xbf16, #tpu.memory_space<vmem>>, vector<1x128x64xbf16>
    %68 = vector.shape_cast %67 : vector<1x128x64xbf16> to vector<128x64xbf16>
    %cst_45 = arith.constant dense<0.000000e+00> : vector<8x64xf32>
    %69 = tpu.matmul %63, %68, %cst_45 {dimension_numbers = #tpu.dot_dimension_numbers<[1], [0], [0], [1], [0, 0, 1, 1], [], []>} : vector<8x128xbf16>, vector<128x64xbf16>, vector<8x64xf32> -> vector<8x64xf32>
    %70 = arith.maximumf %66, %69 : vector<8x64xf32>
    %71 = vector.shape_cast %70 : vector<8x64xf32> to vector<1x8x64xf32>
    %c0_46 = arith.constant 0 : index
    %c0_47 = arith.constant 0 : index
    %c0_48 = arith.constant 0 : index
    %72 = vector.load %arg8[%c0_46, %c0_47, %c0_48] : memref<1x8x64xf32, #tpu.memory_space<vmem>>, vector<1x8x64xf32>
    tpu.vector_store %arg8[%c0_46, %c0_47, %c0_48], %71 {strides = array<i32>} : memref<1x8x64xf32, #tpu.memory_space<vmem>>, vector<1x8x64xf32>,
    return
  }
  func.func @transform_0(%arg0: i32) -> (i32, i32, i32) {
    %c0_i32 = arith.constant 0 : i32
    %c0_i32_0 = arith.constant 0 : i32
    %c0_i32_1 = arith.constant 0 : i32
    return %arg0, %c0_i32, %c0_i32_0 : i32, i32, i32
  }
  func.func @transform_1(%arg0: i32) -> (i32, i32, i32) {
    %c0_i32 = arith.constant 0 : i32
    %c0_i32_0 = arith.constant 0 : i32
    %c0_i32_1 = arith.constant 0 : i32
    %c0_i32_2 = arith.constant 0 : i32
    return %c0_i32, %c0_i32_0, %c0_i32_1 : i32, i32, i32
  }
  func.func @transform_2(%arg0: i32) -> (i32, i32) {
    %c0_i32 = arith.constant 0 : i32
    %c0_i32_0 = arith.constant 0 : i32
    %c0_i32_1 = arith.constant 0 : i32
    return %c0_i32, %c0_i32_0 : i32, i32
  }
  func.func @transform_3(%arg0: i32) -> (i32, i32, i32) {
    %c0_i32 = arith.constant 0 : i32
    %c0_i32_0 = arith.constant 0 : i32
    %c0_i32_1 = arith.constant 0 : i32
    %c0_i32_2 = arith.constant 0 : i32
    return %c0_i32, %c0_i32_0, %c0_i32_1 : i32, i32, i32
  }
  func.func @transform_4(%arg0: i32) -> (i32, i32) {
    %c0_i32 = arith.constant 0 : i32
    %c0_i32_0 = arith.constant 0 : i32
    %c0_i32_1 = arith.constant 0 : i32
    return %c0_i32, %c0_i32_0 : i32, i32
  }
  func.func @transform_5(%arg0: i32) -> (i32, i32, i32) {
    %c0_i32 = arith.constant 0 : i32
    %c0_i32_0 = arith.constant 0 : i32
    %c0_i32_1 = arith.constant 0 : i32
    %c0_i32_2 = arith.constant 0 : i32
    return %c0_i32, %c0_i32_0, %c0_i32_1 : i32, i32, i32
  }
  func.func @transform_6(%arg0: i32) -> (i32, i32, i32) {
    %c0_i32 = arith.constant 0 : i32
    %c0_i32_0 = arith.constant 0 : i32
    %c0_i32_1 = arith.constant 0 : i32
    return %arg0, %c0_i32, %c0_i32_0 : i32, i32, i32
  }
  func.func @transform_7(%arg0: i32) -> (i32, i32, i32) {
    %c0_i32 = arith.constant 0 : i32
    %c0_i32_0 = arith.constant 0 : i32
    %c0_i32_1 = arith.constant 0 : i32
    return %arg0, %c0_i32, %c0_i32_0 : i32, i32, i32
  }
}

</mosaic_0001>

<llo_original>
// kernel: tile.13
$region0: #{tile.13}
  #allocation0 [shape = 's32[1]{0}', space=sflag, size = 0x4, scoped, tag = 'scoped memory for tile.13']
  %s0 = inlined_call_operand.vmem [shape: f32[8], index: 0, kind: input, shape index: {}]
  %s1 = inlined_call_operand.vmem [shape: f32[16,8], index: 1, kind: output, shape index: {}]
  // Predicated region
  $region2: #{tile.13} parent=0 // pred_check
    _
  $region3: #{tile.13} parent=0 // pred_check_branch
    %3 = sbr.rel (0) target = $region5
  $region4: #{tile.13} parent=0 // pred_region
    _
  $region5: #{tile.13} parent=0 // pred_fallthru
    _
  %v4 = vld [vmem:[%s0] ss:$0 sm:$0xff]
  %5 = vst [vmem:[%s1] sm:$0xff] %v4
  %s6 = scalar_lea.vmem %s1, 8
  %7 = vst [vmem:[%s6] sm:$0xff] %v4

// kernel: tile.14
$region0: #{tile.14}
  %s0 = inlined_call_operand.vmem [shape: f32[16,8], index: 0, kind: input, shape index: {}]
  %s1 = inlined_call_operand.vmem [shape: f32[1,128], index: 1, kind: output, shape index: {}]
  $region1: #{tile.14} parent=0
    #allocation0 [shape = 'u8[4096]{0}', space=vmem, size = 0x1000, scoped, tag = 'scoped mem for output reshape']
    %v2 = vld [vmem:[%s0] sm:$0x1]
    %vm3 = vcmask 64512
    %4 = vst.msk [vmem:[#allocation0] sm:$0x1] %vm3, %v2
    %s5 = scalar_lea.vmem %s0, 15
    %v6 = vld [vmem:[%s5] sm:$0x1]
    %7 = vrot.lane.b32.xlu0 %v6, 120
    %v8 = vpop.permute.xlu0 %7
    %vm9 = vcmask 1048512
    %10 = vst.msk [vmem:[#allocation0] sm:$0x1] %vm9, %v8
    %s11 = scalar_lea.vmem %s0, 14
    %v12 = vld [vmem:[%s11] sm:$0x1]
    %13 = vrot.lane.b32.xlu0 %v12, 112
    %v14 = vpop.permute.xlu0 %13
    %vm15 = vcmask 982912
    %16 = vst.msk [vmem:[#allocation0] sm:$0x1] %vm15, %v14
    %s17 = scalar_lea.vmem %s0, 13
    %v18 = vld [vmem:[%s17] sm:$0x1]
    %19 = vrot.lane.b32.xlu0 %v18, 104
    %v20 = vpop.permute.xlu0 %19
    %vm21 = vcmask 917312
    %22 = vst.msk [vmem:[#allocation0] sm:$0x1] %vm21, %v20
    %s23 = scalar_lea.vmem %s0, 12
    %v24 = vld [vmem:[%s23] sm:$0x1]
    %25 = vrot.lane.b32.xlu0 %v24, 96
    %v26 = vpop.permute.xlu0 %25
    %vm27 = vcmask 851712
    %28 = vst.msk [vmem:[#allocation0] sm:$0x1] %vm27, %v26
    %s29 = scalar_lea.vmem %s0, 11
    %v30 = vld [vmem:[%s29] sm:$0x1]
    %31 = vrot.lane.b32.xlu0 %v30, 88
    %v32 = vpop.permute.xlu0 %31
    %vm33 = vcmask 786112
    %34 = vst.msk [vmem:[#allocation0] sm:$0x1] %vm33, %v32
    %s35 = scalar_lea.vmem %s0, 10
    %v36 = vld [vmem:[%s35] sm:$0x1]
    %37 = vrot.lane.b32.xlu0 %v36, 80
    %v38 = vpop.permute.xlu0 %37
    %vm39 = vcmask 720512
    %40 = vst.msk [vmem:[#allocation0] sm:$0x1] %vm39, %v38
    %s41 = scalar_lea.vmem %s0, 9
    %v42 = vld [vmem:[%s41] sm:$0x1]
    %43 = vrot.lane.b32.xlu0 %v42, 72
    %v44 = vpop.permute.xlu0 %43
    %vm45 = vcmask 654912
    %46 = vst.msk [vmem:[#allocation0] sm:$0x1] %vm45, %v44
    %s47 = scalar_lea.vmem %s0, 8
    %v48 = vld [vmem:[%s47] sm:$0x1]
    %49 = vrot.lane.b32.xlu0 %v48, 64
    %v50 = vpop.permute.xlu0 %49
    %vm51 = vcmask 589312
    %52 = vst.msk [vmem:[#allocation0] sm:$0x1] %vm51, %v50
    %s53 = scalar_lea.vmem %s0, 7
    %v54 = vld [vmem:[%s53] sm:$0x1]
    %55 = vrot.lane.b32.xlu0 %v54, 56
    %v56 = vpop.permute.xlu0 %55
    %vm57 = vcmask 523712
    %58 = vst.msk [vmem:[#allocation0] sm:$0x1] %vm57, %v56
    %s59 = scalar_lea.vmem %s0, 6
    %v60 = vld [vmem:[%s59] sm:$0x1]
    %61 = vrot.lane.b32.xlu0 %v60, 48
    %v62 = vpop.permute.xlu0 %61
    %vm63 = vcmask 458112
    %64 = vst.msk [vmem:[#allocation0] sm:$0x1] %vm63, %v62
    %s65 = scalar_lea.vmem %s0, 5
    %v66 = vld [vmem:[%s65] sm:$0x1]
    %67 = vrot.lane.b32.xlu0 %v66, 40
    %v68 = vpop.permute.xlu0 %67
    %vm69 = vcmask 392512
    %70 = vst.msk [vmem:[#allocation0] sm:$0x1] %vm69, %v68
    %s71 = scalar_lea.vmem %s0, 4
    %v72 = vld [vmem:[%s71] sm:$0x1]
    %73 = vrot.lane.b32.xlu0 %v72, 32
    %v74 = vpop.permute.xlu0 %73
    %vm75 = vcmask 326912
    %76 = vst.msk [vmem:[#allocation0] sm:$0x1] %vm75, %v74
    %s77 = scalar_lea.vmem %s0, 3
    %v78 = vld [vmem:[%s77] sm:$0x1]
    %79 = vrot.lane.b32.xlu0 %v78, 24
    %v80 = vpop.permute.xlu0 %79
    %vm81 = vcmask 261312
    %82 = vst.msk [vmem:[#allocation0] sm:$0x1] %vm81, %v80
    %s83 = scalar_lea.vmem %s0, 2
    %v84 = vld [vmem:[%s83] sm:$0x1]
    %85 = vrot.lane.b32.xlu0 %v84, 16
    %v86 = vpop.permute.xlu0 %85
    %vm87 = vcmask 195712
    %88 = vst.msk [vmem:[#allocation0] sm:$0x1] %vm87, %v86
    %s89 = scalar_lea.vmem %s0, 1
    %v90 = vld [vmem:[%s89] sm:$0x1]
    %91 = vrot.lane.b32.xlu0 %v90, 8
    %v92 = vpop.permute.xlu0 %91
    %vm93 = vcmask 130112
    %94 = vst.msk [vmem:[#allocation0] sm:$0x1] %vm93, %v92
    %s96 = sshll.u32 1, 1
    %s97 = ssub.s32 %s96, 1
    %v99 = vld [vmem:[#allocation0] sm:%s97]
    %s100 = sshll.u32 1, 1
    %s101 = ssub.s32 %s100, 1
    %102 = vst [vmem:[%s1] sm:%s101] %v99

// kernel: down_pallas.1
$region0: #{down_pallas.1}
  #allocation0 [shape = 'u32[]', space=smem, size = 0x4, offset = 0x4, fixed_abs, tag = 'smem constant byte address 0x4 - core index']
  #allocation1 [shape = 'u32[144,128]{1,0:T(1,128)}', space=vmem, size = 0x12000, scoped, tag = 'internal scratch']
  %s0 = inlined_call_operand.vmem [shape: bf16[2,18,64], index: 0, kind: input, shape index: {}]
  %s1 = inlined_call_operand.vmem [shape: bf16[3,64,128], index: 1, kind: input, shape index: {}]
  %s2 = inlined_call_operand.vmem [shape: f32[1,128], index: 2, kind: input, shape index: {}]
  %s3 = inlined_call_operand.vmem [shape: bf16[3,128,128], index: 3, kind: input, shape index: {}]
  %s4 = inlined_call_operand.vmem [shape: f32[1,128], index: 4, kind: input, shape index: {}]
  %s5 = inlined_call_operand.vmem [shape: bf16[2,128,64], index: 5, kind: input, shape index: {}]
  %s6 = inlined_call_operand.vmem [shape: f32[2,16,128], index: 6, kind: output, shape index: {0}]
  %s7 = inlined_call_operand.vmem [shape: f32[2,8,64], index: 7, kind: output, shape index: {1}]
  %8 = xla_tuple %s6, %s7
  %s9 = sld [smem:[#allocation0]]
  $region65: #{down_pallas.1} parent=0
    _
  %s11 = ssub.s32 1, %s9
  %s12 = scalar_select 0, %s11, %s9
  loop: start=0, step=1, limit=4
  $region2: #{down_pallas.1} parent=0 // loop_pre_header
    _
  $region3: #{down_pallas.1} parent=0 // loop_header
    %s14 = sphi 0, %s18
    %p15 = scmp.ge.s32.totalorder %s14, 4
    %s24 = sphi 0, %s26
    %s27 = sphi 0, %s24
    %s28 = sphi 0, %s27
    %s44 = sphi 0, %s28
    %s48 = sphi 0, %s48
    %s50 = sphi 0, %s48
    %s51 = sphi 0, %s50
    %s65 = sphi 0, %s51
    %s69 = sphi 0, %s69
    %s71 = sphi 0, %s69
    %s72 = sphi 0, %s71
    %s86 = sphi 0, %s72
    %s90 = sphi 0, %s90
    %s92 = sphi 0, %s90
    %s93 = sphi 0, %s92
    %s107 = sphi 0, %s93
    %s111 = sphi 0, %s111
    %s113 = sphi 0, %s111
    %s114 = sphi 0, %s113
    %s128 = sphi 0, %s114
    %s132 = sphi 0, %s132
    %s134 = sphi 0, %s132
    %s135 = sphi 0, %s134
    %s149 = sphi 0, %s135
    %s155 = sphi 0, %s157
    %s158 = sphi 0, %s155
    %s159 = sphi 0, %s158
    %s175 = sphi 0, %s159
    %s181 = sphi 0, %s183
    %s184 = sphi 0, %s181
    %s185 = sphi 0, %s184
    %s201 = sphi 0, %s185
  $region4: #{down_pallas.1} parent=0 // loop_header_branch
    %17 = sbr.rel (%p15) target = $region8
  $region5: #{down_pallas.1} parent=0 // loop_body
    %s19 = ssub.s32 %s14, 1
    %s20 = ssub.s32 %s14, 2
    %s21 = sadd.s32 %s14, 1
    %s22 = ssub.s32 %s14, %s21
    %p23 = scmp.eq.s32.totalorder %s22, 0
    %s25 = sadd.s32 %s24, 1
    %s26 = scalar_select %p23, %s24, %s25
    %p29 = pneg %p23
    %p30 = scmp.eq.s32.totalorder %s14, 1
    %p31 = por %p29, %p30
    %p32 = scmp.ne.s32.totalorder %s24, %s27
    %p33 = scmp.eq.s32.totalorder %s14, 0
    %p34 = por %p32, %p33
    %p35 = scmp.ne.s32.totalorder %s24, %s27
    %p36 = scmp.eq.s32.totalorder %s19, 1
    %p37 = por %p35, %p36
    %p38 = scmp.ne.s32.totalorder %s27, %s28
    %p39 = scmp.eq.s32.totalorder %s19, 0
    %p40 = por %p38, %p39
    %p41 = scmp.ne.s32.totalorder %s27, %s28
    %p42 = scmp.eq.s32.totalorder %s20, 1
    %p43 = por %p41, %p42
    %p45 = scmp.ne.s32.totalorder %s28, %s44
    %p46 = scmp.eq.s32.totalorder %s20, 0
    %p47 = por %p45, %p46
    %s49 = sadd.s32 %s48, 1
    %p52 = scmp.eq.s32.totalorder %s14, 1
    %p53 = scmp.ne.s32.totalorder %s48, %s50
    %p54 = scmp.eq.s32.totalorder %s14, 0
    %p55 = por %p53, %p54
    %p56 = scmp.ne.s32.totalorder %s48, %s50
    %p57 = scmp.eq.s32.totalorder %s19, 1
    %p58 = por %p56, %p57
    %p59 = scmp.ne.s32.totalorder %s50, %s51
    %p60 = scmp.eq.s32.totalorder %s19, 0
    %p61 = por %p59, %p60
    %p62 = scmp.ne.s32.totalorder %s50, %s51
    %p63 = scmp.eq.s32.totalorder %s20, 1
    %p64 = por %p62, %p63
    %p66 = scmp.ne.s32.totalorder %s51, %s65
    %p67 = scmp.eq.s32.totalorder %s20, 0
    %p68 = por %p66, %p67
    %s70 = sadd.s32 %s69, 1
    %p73 = scmp.eq.s32.totalorder %s14, 1
    %p74 = scmp.ne.s32.totalorder %s69, %s71
    %p75 = scmp.eq.s32.totalorder %s14, 0
    %p76 = por %p74, %p75
    %p77 = scmp.ne.s32.totalorder %s69, %s71
    %p78 = scmp.eq.s32.totalorder %s19, 1
    %p79 = por %p77, %p78
    %p80 = scmp.ne.s32.totalorder %s71, %s72
    %p81 = scmp.eq.s32.totalorder %s19, 0
    %p82 = por %p80, %p81
    %p83 = scmp.ne.s32.totalorder %s71, %s72
    %p84 = scmp.eq.s32.totalorder %s20, 1
    %p85 = por %p83, %p84
    %p87 = scmp.ne.s32.totalorder %s72, %s86
    %p88 = scmp.eq.s32.totalorder %s20, 0
    %p89 = por %p87, %p88
    %s91 = sadd.s32 %s90, 1
    %p94 = scmp.eq.s32.totalorder %s14, 1
    %p95 = scmp.ne.s32.totalorder %s90, %s92
    %p96 = scmp.eq.s32.totalorder %s14, 0
    %p97 = por %p95, %p96
    %p98 = scmp.ne.s32.totalorder %s90, %s92
    %p99 = scmp.eq.s32.totalorder %s19, 1
    %p100 = por %p98, %p99
    %p101 = scmp.ne.s32.totalorder %s92, %s93
    %p102 = scmp.eq.s32.totalorder %s19, 0
    %p103 = por %p101, %p102
    %p104 = scmp.ne.s32.totalorder %s92, %s93
    %p105 = scmp.eq.s32.totalorder %s20, 1
    %p106 = por %p104, %p105
    %p108 = scmp.ne.s32.totalorder %s93, %s107
    %p109 = scmp.eq.s32.totalorder %s20, 0
    %p110 = por %p108, %p109
    %s112 = sadd.s32 %s111, 1
    %p115 = scmp.eq.s32.totalorder %s14, 1
    %p116 = scmp.ne.s32.totalorder %s111, %s113
    %p117 = scmp.eq.s32.totalorder %s14, 0
    %p118 = por %p116, %p117
    %p119 = scmp.ne.s32.totalorder %s111, %s113
    %p120 = scmp.eq.s32.totalorder %s19, 1
    %p121 = por %p119, %p120
    %p122 = scmp.ne.s32.totalorder %s113, %s114
    %p123 = scmp.eq.s32.totalorder %s19, 0
    %p124 = por %p122, %p123
    %p125 = scmp.ne.s32.totalorder %s113, %s114
    %p126 = scmp.eq.s32.totalorder %s20, 1
    %p127 = por %p125, %p126
    %p129 = scmp.ne.s32.totalorder %s114, %s128
    %p130 = scmp.eq.s32.totalorder %s20, 0
    %p131 = por %p129, %p130
    %s133 = sadd.s32 %s132, 1
    %p136 = scmp.eq.s32.totalorder %s14, 1
    %p137 = scmp.ne.s32.totalorder %s132, %s134
    %p138 = scmp.eq.s32.totalorder %s14, 0
    %p139 = por %p137, %p138
    %p140 = scmp.ne.s32.totalorder %s132, %s134
    %p141 = scmp.eq.s32.totalorder %s19, 1
    %p142 = por %p140, %p141
    %p143 = scmp.ne.s32.totalorder %s134, %s135
    %p144 = scmp.eq.s32.totalorder %s19, 0
    %p145 = por %p143, %p144
    %p146 = scmp.ne.s32.totalorder %s134, %s135
    %p147 = scmp.eq.s32.totalorder %s20, 1
    %p148 = por %p146, %p147
    %p150 = scmp.ne.s32.totalorder %s135, %s149
    %p151 = scmp.eq.s32.totalorder %s20, 0
    %p152 = por %p150, %p151
    %s153 = ssub.s32 %s14, %s21
    %p154 = scmp.eq.s32.totalorder %s153, 0
    %s156 = sadd.s32 %s155, 1
    %s157 = scalar_select %p154, %s155, %s156
    %p160 = pneg %p154
    %p161 = scmp.eq.s32.totalorder %s14, 1
    %p162 = por %p160, %p161
    %p163 = scmp.ne.s32.totalorder %s155, %s158
    %p164 = scmp.eq.s32.totalorder %s14, 0
    %p165 = por %p163, %p164
    %p166 = scmp.ne.s32.totalorder %s155, %s158
    %p167 = scmp.eq.s32.totalorder %s19, 1
    %p168 = por %p166, %p167
    %p169 = scmp.ne.s32.totalorder %s158, %s159
    %p170 = scmp.eq.s32.totalorder %s19, 0
    %p171 = por %p169, %p170
    %p172 = scmp.ne.s32.totalorder %s158, %s159
    %p173 = scmp.eq.s32.totalorder %s20, 1
    %p174 = por %p172, %p173
    %p176 = scmp.ne.s32.totalorder %s159, %s175
    %p177 = scmp.eq.s32.totalorder %s20, 0
    %p178 = por %p176, %p177
    %s179 = ssub.s32 %s14, %s21
    %p180 = scmp.eq.s32.totalorder %s179, 0
    %s182 = sadd.s32 %s181, 1
    %s183 = scalar_select %p180, %s181, %s182
    %p186 = pneg %p180
    %p187 = scmp.eq.s32.totalorder %s14, 1
    %p188 = por %p186, %p187
    %p189 = scmp.ne.s32.totalorder %s181, %s184
    %p190 = scmp.eq.s32.totalorder %s14, 0
    %p191 = por %p189, %p190
    %p192 = scmp.ne.s32.totalorder %s181, %s184
    %p193 = scmp.eq.s32.totalorder %s19, 1
    %p194 = por %p192, %p193
    %p195 = scmp.ne.s32.totalorder %s184, %s185
    %p196 = scmp.eq.s32.totalorder %s19, 0
    %p197 = por %p195, %p196
    %p198 = scmp.ne.s32.totalorder %s184, %s185
    %p199 = scmp.eq.s32.totalorder %s20, 1
    %p200 = por %p198, %p199
    %p202 = scmp.ne.s32.totalorder %s185, %s201
    %p203 = scmp.eq.s32.totalorder %s20, 0
    %p204 = por %p202, %p203
    %p205 = scmp.le.s32.totalorder 1, %s14
    %p206 = scmp.lt.s32.totalorder %s14, 3
    %p207 = pnand %p205, %p206
    %p208 = pneg %p207
    // Predicated region
    $region9: #{down_pallas.1} parent=5 // pred_check
      _
    $region10: #{down_pallas.1} parent=5 // pred_check_branch
      %210 = sbr.rel (%p207) target = $region12
    $region11: #{down_pallas.1} parent=5 // pred_region
      %s211 = ssub.s32 %s14, 1
      // Predicated region
      $region13: #{down_pallas.1} parent=11 // pred_check
        %p212 = pneg %p61
      $region14: #{down_pallas.1} parent=11 // pred_check_branch
        %214 = sbr.rel (%p212) target = $region16
      $region15: #{down_pallas.1} parent=11 // pred_region
        _
      $region16: #{down_pallas.1} parent=11 // pred_fallthru
        _
      // Predicated region
      $region17: #{down_pallas.1} parent=11 // pred_check
        %p215 = pneg %p82
      $region18: #{down_pallas.1} parent=11 // pred_check_branch
        %217 = sbr.rel (%p215) target = $region20
      $region19: #{down_pallas.1} parent=11 // pred_region
        _
      $region20: #{down_pallas.1} parent=11 // pred_fallthru
        _
      // Predicated region
      $region21: #{down_pallas.1} parent=11 // pred_check
        %p218 = pneg %p103
      $region22: #{down_pallas.1} parent=11 // pred_check_branch
        %220 = sbr.rel (%p218) target = $region24
      $region23: #{down_pallas.1} parent=11 // pred_region
        _
      $region24: #{down_pallas.1} parent=11 // pred_fallthru
        _
      // Predicated region
      $region25: #{down_pallas.1} parent=11 // pred_check
        %p221 = pneg %p124
      $region26: #{down_pallas.1} parent=11 // pred_check_branch
        %223 = sbr.rel (%p221) target = $region28
      $region27: #{down_pallas.1} parent=11 // pred_region
        _
      $region28: #{down_pallas.1} parent=11 // pred_fallthru
        _
      // Predicated region
      $region29: #{down_pallas.1} parent=11 // pred_check
        %p224 = pneg %p145
      $region30: #{down_pallas.1} parent=11 // pred_check_branch
        %226 = sbr.rel (%p224) target = $region32
      $region31: #{down_pallas.1} parent=11 // pred_region
        _
      $region32: #{down_pallas.1} parent=11 // pred_fallthru
        _
    $region12: #{down_pallas.1} parent=5 // pred_fallthru
      _
    %p227 = scmp.lt.s32.totalorder %s14, 2
    // Predicated region
    $region33: #{down_pallas.1} parent=5 // pred_check
      %p228 = pneg %p227
    $region34: #{down_pallas.1} parent=5 // pred_check_branch
      %230 = sbr.rel (%p228) target = $region36
    $region35: #{down_pallas.1} parent=5 // pred_region
      // Predicated region
      $region37: #{down_pallas.1} parent=35 // pred_check
        %p231 = pneg %p34
      $region38: #{down_pallas.1} parent=35 // pred_check_branch
        %233 = sbr.rel (%p231) target = $region40
      $region39: #{down_pallas.1} parent=35 // pred_region
        %p234 = scmp.lt.s32.totalorder %s14, 1
        %s235 = scalar_select %p234, %s14, 1
        %s236 = smul.addr %s235, 3
        %s237 = smul.addr %s236, 4
        %s238 = scalar_lea.vmem %s0, %s237
      $region40: #{down_pallas.1} parent=35 // pred_fallthru
        _
    $region36: #{down_pallas.1} parent=5 // pred_fallthru
      _
    %p239 = scmp.le.s32.totalorder 1, %s14
    %p240 = scmp.lt.s32.totalorder %s14, 3
    %p241 = pnand %p239, %p240
    %p242 = pneg %p241
    // Predicated region
    $region41: #{down_pallas.1} parent=5 // pred_check
      _
    $region42: #{down_pallas.1} parent=5 // pred_check_branch
      %244 = sbr.rel (%p241) target = $region44
    $region43: #{down_pallas.1} parent=5 // pred_region
      %s245 = ssub.s32 %s14, 1
      %p246 = scmp.lt.s32.totalorder %s19, 1
      %s247 = scalar_select %p246, %s19, 1
      %s248 = smul.addr %s247, 3
      %s249 = smul.addr %s248, 4
      %s250 = scalar_lea.vmem %s0, %s249
      %p251 = pneg %p40
      %p252 = pneg %p37
      %p253 = pneg %p61
      %p254 = pneg %p58
      %p255 = pneg %p82
      %p256 = pneg %p79
      %p257 = pneg %p103
      %p258 = pneg %p100
      %p259 = pneg %p124
      %p260 = pneg %p121
      %p261 = pneg %p145
      %p262 = pneg %p142
      %p263 = pneg %p171
      %p264 = pneg %p168
      %p265 = scmp.lt.s32.totalorder %s19, 1
      %s266 = scalar_select %p265, %s19, 1
      %s267 = smul.addr %s266, 2
      %s268 = smul.addr %s267, 8
      %s269 = scalar_lea.vmem %s6, %s268
      %p270 = pneg %p197
      %p271 = pneg %p194
      %p272 = scmp.lt.s32.totalorder %s19, 1
      %s273 = scalar_select %p272, %s19, 1
      %s274 = smul.addr %s273, 8
      %s275 = scalar_lea.vmem %s7, %s274
      %p276 = scmp.lt.s32.totalorder %s19, 1
      %s277 = scalar_select %p276, %s19, 1
      %s278 = smul.addr %s277, 3
      %s279 = smul.addr %s278, 4
      %s280 = scalar_lea.vmem %s0, %s279
      %p281 = scmp.lt.s32.totalorder %s19, 1
      %s282 = scalar_select %p281, %s19, 1
      %s283 = smul.addr %s282, 2
      %s284 = smul.addr %s283, 8
      %s285 = scalar_lea.vmem %s6, %s284
      %p286 = scmp.lt.s32.totalorder %s19, 1
      %s287 = scalar_select %p286, %s19, 1
      %s288 = smul.addr %s287, 8
      %s289 = scalar_lea.vmem %s7, %s288
      %v291 = vld [vmem:[%s280] sm:$0xf]
      %v292 = vld [vmem:[%s280 + $0x4] sm:$0xf]
      %v293 = vld [vmem:[%s280 + $0x8] sm:$0x1]
      %v294 = vld [vmem:[%s1] sm:$0xf]
      %v295 = vld [vmem:[%s1 + $0x4] sm:$0xf]
      %v296 = vld [vmem:[%s1 + $0x8] sm:$0xf]
      %v297 = vld [vmem:[%s1 + $0xc] sm:$0xf]
      %v298 = vld [vmem:[%s1 + $0x10] sm:$0xf]
      %v299 = vld [vmem:[%s1 + $0x14] sm:$0xf]
      %v300 = vld [vmem:[%s1 + $0x18] sm:$0xf]
      %v301 = vld [vmem:[%s1 + $0x1c] sm:$0xf]
      %s302 = scalar_lea.vmem %s1, 32
      %v303 = vld [vmem:[%s302] sm:$0xf]
      %v304 = vld [vmem:[%s302 + $0x4] sm:$0xf]
      %v305 = vld [vmem:[%s302 + $0x8] sm:$0xf]
      %v306 = vld [vmem:[%s302 + $0xc] sm:$0xf]
      %v307 = vld [vmem:[%s302 + $0x10] sm:$0xf]
      %v308 = vld [vmem:[%s302 + $0x14] sm:$0xf]
      %v309 = vld [vmem:[%s302 + $0x18] sm:$0xf]
      %v310 = vld [vmem:[%s302 + $0x1c] sm:$0xf]
      %v314 = vunpack.c.l.b16 %v291
      %v315 = vunpack.c.l.b16 %v292
      %v316 = vunpack.c.l.b16 %v293
      %v317 = vpack.c.b16 %v315, %v314
      %v318 = vpack.c.b16 %v316, %v316
      %vm319 = vsmask.f32 7424
      %v321 = vshrl.u32 %v317, 16
      %v323 = vshll.u32 %v317, 16
      %v325 = vrot.slane %v323, 1
      %v326 = vor.u32 %v321, %v325
      %v328 = vshll.u32 %v318, 16
      %v330 = vrot.slane %v328, 1
      %v331 = vsel %vm319, %v326, %v330
      %v340 = vunpack.c.l.b16 %v303
      %v341 = vunpack.c.l.b16 %v304
      %v342 = vunpack.c.l.b16 %v305
      %v343 = vunpack.c.l.b16 %v306
      %v344 = vunpack.c.l.b16 %v307
      %v345 = vunpack.c.l.b16 %v308
      %v346 = vunpack.c.l.b16 %v309
      %v347 = vunpack.c.l.b16 %v310
      %v348 = vpack.c.b16 %v341, %v340
      %v349 = vpack.c.b16 %v343, %v342
      %v350 = vpack.c.b16 %v345, %v344
      %v351 = vpack.c.b16 %v347, %v346
      %vm356 = vcmask 523264
      %v358 = vsel %vm356, %v331, 0
      %360 = vmatprep.subr.bf16.mxu0 0
      %361 = vmatpush1.bf16.msra.mxu0 0
      %362 = vmatprep.subr.bf16.mxu0 0
      %363 = vmatpush1.bf16.msra.mxu0 0
      %364 = vmatprep.subr.bf16.mxu0 0
      %365 = vmatpush1.bf16.msra.mxu0 0
      %366 = vmatprep.subr.bf16.mxu0 0
      %367 = vmatpush1.bf16.msra.mxu0 0
      %368 = vmatprep.subr.bf16.mxu0 0
      %369 = vmatpush1.bf16.msra.mxu0 %v351
      %370 = vmatprep.subr.bf16.mxu0 0
      %371 = vmatpush1.bf16.msra.mxu0 %v350
      %372 = vmatprep.subr.bf16.mxu0 0
      %373 = vmatpush1.bf16.msra.mxu0 %v349
      %374 = vmatprep.subr.bf16.mxu0 0
      %375 = vmatpush1.bf16.msra.mxu0 %v348
      %376 = vmatprep.subr.bf16.mxu0 0
      %377 = vmatpush2.bf16.msra.mxu0 0
      %378 = vmatprep.subr.bf16.mxu0 0
      %379 = vmatpush2.bf16.msra.mxu0 0
      %380 = vmatprep.subr.bf16.mxu0 0
      %381 = vmatpush2.bf16.msra.mxu0 0
      %382 = vmatprep.subr.bf16.mxu0 0
      %383 = vmatpush2.bf16.msra.mxu0 0
      %384 = vmatprep.subr.bf16.mxu0 0
      %385 = vmatpush2.bf16.msra.mxu0 0
      %386 = vmatprep.subr.bf16.mxu0 0
      %387 = vmatpush2.bf16.msra.mxu0 0
      %388 = vmatprep.subr.bf16.mxu0 0
      %389 = vmatpush2.bf16.msra.mxu0 0
      %390 = vmatprep.subr.bf16.mxu0 0
      %391 = vmatpush2.bf16.msra.mxu0 0
      %392 = vmatprep.mubr.bf16.mxu0 0
      %393 = vmatmul.mubr.bf16.gmra.mxu0 %v358
      %v394 = vpop.f32.mrf.mxu0
      %v395 = vadd.f32 0.0, %v394
      %v396 = vpop.f32.mrf.mxu0
      %v397 = vpop.f32.mrf.mxu0
      %v398 = vadd.f32 0.0, %v397
      %v399 = vpop.f32.mrf.mxu0
      %400 = vdwg.mxu0
      %v409 = vunpack.c.l.b16 %v294
      %v410 = vunpack.c.l.b16 %v295
      %v411 = vunpack.c.l.b16 %v296
      %v412 = vunpack.c.l.b16 %v297
      %v413 = vunpack.c.l.b16 %v298
      %v414 = vunpack.c.l.b16 %v299
      %v415 = vunpack.c.l.b16 %v300
      %v416 = vunpack.c.l.b16 %v301
      %v417 = vpack.c.b16 %v410, %v409
      %v418 = vpack.c.b16 %v412, %v411
      %v419 = vpack.c.b16 %v414, %v413
      %v420 = vpack.c.b16 %v416, %v415
      %v425 = vsel %vm356, %v317, 0
      %427 = vmatprep.subr.bf16.mxu0 0
      %428 = vmatpush1.bf16.msra.mxu0 0
      %429 = vmatprep.subr.bf16.mxu0 0
      %430 = vmatpush1.bf16.msra.mxu0 0
      %431 = vmatprep.subr.bf16.mxu0 0
      %432 = vmatpush1.bf16.msra.mxu0 0
      %433 = vmatprep.subr.bf16.mxu0 0
      %434 = vmatpush1.bf16.msra.mxu0 0
      %435 = vmatprep.subr.bf16.mxu0 0
      %436 = vmatpush1.bf16.msra.mxu0 %v420
      %437 = vmatprep.subr.bf16.mxu0 0
      %438 = vmatpush1.bf16.msra.mxu0 %v419
      %439 = vmatprep.subr.bf16.mxu0 0
      %440 = vmatpush1.bf16.msra.mxu0 %v418
      %441 = vmatprep.subr.bf16.mxu0 0
      %442 = vmatpush1.bf16.msra.mxu0 %v417
      %443 = vmatprep.subr.bf16.mxu0 0
      %444 = vmatpush2.bf16.msra.mxu0 0
      %445 = vmatprep.subr.bf16.mxu0 0
      %446 = vmatpush2.bf16.msra.mxu0 0
      %447 = vmatprep.subr.bf16.mxu0 0
      %448 = vmatpush2.bf16.msra.mxu0 0
      %449 = vmatprep.subr.bf16.mxu0 0
      %450 = vmatpush2.bf16.msra.mxu0 0
      %451 = vmatprep.subr.bf16.mxu0 0
      %452 = vmatpush2.bf16.msra.mxu0 0
      %453 = vmatprep.subr.bf16.mxu0 0
      %454 = vmatpush2.bf16.msra.mxu0 0
      %455 = vmatprep.subr.bf16.mxu0 0
      %456 = vmatpush2.bf16.msra.mxu0 0
      %457 = vmatprep.subr.bf16.mxu0 0
      %458 = vmatpush2.bf16.msra.mxu0 0
      %459 = vmatprep.mubr.bf16.mxu0 0
      %460 = vmatmul.mubr.bf16.gmra.mxu0 %v425
      %v461 = vpop.f32.mrf.mxu0
      %v462 = vadd.f32 %v395, %v461
      %v463 = vpop.f32.mrf.mxu0
      %v464 = vpop.f32.mrf.mxu0
      %v465 = vadd.f32 %v398, %v464
      %v466 = vpop.f32.mrf.mxu0
      %467 = vdwg.mxu0
      %s468 = scalar_lea.vmem %s1, 64
      %v469 = vld [vmem:[%s468] sm:$0xf]
      %v470 = vld [vmem:[%s468 + $0x4] sm:$0xf]
      %v471 = vld [vmem:[%s468 + $0x8] sm:$0xf]
      %v472 = vld [vmem:[%s468 + $0xc] sm:$0xf]
      %v473 = vld [vmem:[%s468 + $0x10] sm:$0xf]
      %v474 = vld [vmem:[%s468 + $0x14] sm:$0xf]
      %v475 = vld [vmem:[%s468 + $0x18] sm:$0xf]
      %v476 = vld [vmem:[%s468 + $0x1c] sm:$0xf]
      %vm477 = vcmask 1046528
      %v478 = vrot.slane %v317, 1
      %v479 = vrot.slane %v318, 1
      %v480 = vsel %vm477, %v478, %v479
      %v489 = vunpack.c.l.b16 %v469
      %v490 = vunpack.c.l.b16 %v470
      %v491 = vunpack.c.l.b16 %v471
      %v492 = vunpack.c.l.b16 %v472
      %v493 = vunpack.c.l.b16 %v473
      %v494 = vunpack.c.l.b16 %v474
      %v495 = vunpack.c.l.b16 %v475
      %v496 = vunpack.c.l.b16 %v476
      %v497 = vpack.c.b16 %v490, %v489
      %v498 = vpack.c.b16 %v492, %v491
      %v499 = vpack.c.b16 %v494, %v493
      %v500 = vpack.c.b16 %v496, %v495
      %v506 = vsel %vm356, %v480, 0
      %508 = vmatprep.subr.bf16.mxu0 0
      %509 = vmatpush1.bf16.msra.mxu0 0
      %510 = vmatprep.subr.bf16.mxu0 0
      %511 = vmatpush1.bf16.msra.mxu0 0
      %512 = vmatprep.subr.bf16.mxu0 0
      %513 = vmatpush1.bf16.msra.mxu0 0
      %514 = vmatprep.subr.bf16.mxu0 0
      %515 = vmatpush1.bf16.msra.mxu0 0
      %516 = vmatprep.subr.bf16.mxu0 0
      %517 = vmatpush1.bf16.msra.mxu0 %v500
      %518 = vmatprep.subr.bf16.mxu0 0
      %519 = vmatpush1.bf16.msra.mxu0 %v499
      %520 = vmatprep.subr.bf16.mxu0 0
      %521 = vmatpush1.bf16.msra.mxu0 %v498
      %522 = vmatprep.subr.bf16.mxu0 0
      %523 = vmatpush1.bf16.msra.mxu0 %v497
      %524 = vmatprep.subr.bf16.mxu0 0
      %525 = vmatpush2.bf16.msra.mxu0 0
      %526 = vmatprep.subr.bf16.mxu0 0
      %527 = vmatpush2.bf16.msra.mxu0 0
      %528 = vmatprep.subr.bf16.mxu0 0
      %529 = vmatpush2.bf16.msra.mxu0 0
      %530 = vmatprep.subr.bf16.mxu0 0
      %531 = vmatpush2.bf16.msra.mxu0 0
      %532 = vmatprep.subr.bf16.mxu0 0
      %533 = vmatpush2.bf16.msra.mxu0 0
      %534 = vmatprep.subr.bf16.mxu0 0
      %535 = vmatpush2.bf16.msra.mxu0 0
      %536 = vmatprep.subr.bf16.mxu0 0
      %537 = vmatpush2.bf16.msra.mxu0 0
      %538 = vmatprep.subr.bf16.mxu0 0
      %539 = vmatpush2.bf16.msra.mxu0 0
      %540 = vmatprep.mubr.bf16.mxu0 0
      %541 = vmatmul.mubr.bf16.gmra.mxu0 %v506
      %v542 = vpop.f32.mrf.mxu0
      %v543 = vadd.f32 0.0, %v542
      %v544 = vpop.f32.mrf.mxu0
      %v545 = vpop.f32.mrf.mxu0
      %v546 = vadd.f32 0.0, %v545
      %v547 = vpop.f32.mrf.mxu0
      %548 = vdwg.mxu0
      %v549 = vadd.f32 %v462, %v543
      %v550 = vadd.f32 %v465, %v546
      %v551 = vld [vmem:[%s2] sm:$0x1]
      %v553 = vlaneseq
      %v554 = vshrl.u32 %v553, 7
      %v555 = vsub.s32 0, %v554
      %v556 = vrot.slane %v551, %v555
      %v558 = vadd.f32 %v549, %v556
      %v559 = vadd.f32 %v550, %v556
      %vm560 = vcmp.gt.f32.partialorder %v558, 0.0
      %vm561 = vcmp.gt.f32.partialorder %v559, 0.0
      %v562 = vmul.f32 %v558, 0.01
      %v563 = vmul.f32 %v559, 0.01
      %v564 = vsel %vm560, %v558, %v562
      %v565 = vsel %vm561, %v559, %v563
      %v566 = vpack.c.bf16 %v565, %v564
      %v568 = vshrl.u32 %v566, 16
      %v570 = vrot.slane %v568, 7
      %v571 = vshll.u32 %v566, 16
      %v573 = vor.u32 %v570, %v571
      %vm576 = vcmask 1040384
      %vm577 = vsmask.f32 256
      %vm578 = vmand %vm576, %vm577
      %v579 = vsel %vm578, 0, %v573
      %v580 = vsel %vm578, %v570, 0
      %v581 = vld [vmem:[%s3] sm:$0xf]
      %v582 = vld [vmem:[%s3 + $0x4] sm:$0xf]
      %v583 = vld [vmem:[%s3 + $0x8] sm:$0xf]
      %v584 = vld [vmem:[%s3 + $0xc] sm:$0xf]
      %v585 = vld [vmem:[%s3 + $0x10] sm:$0xf]
      %v586 = vld [vmem:[%s3 + $0x14] sm:$0xf]
      %v587 = vld [vmem:[%s3 + $0x18] sm:$0xf]
      %v588 = vld [vmem:[%s3 + $0x1c] sm:$0xf]
      %v589 = vld [vmem:[%s3 + $0x20] sm:$0xf]
      %v590 = vld [vmem:[%s3 + $0x24] sm:$0xf]
      %v591 = vld [vmem:[%s3 + $0x28] sm:$0xf]
      %v592 = vld [vmem:[%s3 + $0x2c] sm:$0xf]
      %v593 = vld [vmem:[%s3 + $0x30] sm:$0xf]
      %v594 = vld [vmem:[%s3 + $0x34] sm:$0xf]
      %v595 = vld [vmem:[%s3 + $0x38] sm:$0xf]
      %v596 = vld [vmem:[%s3 + $0x3c] sm:$0xf]
      %s597 = scalar_lea.vmem %s3, 64
      %v598 = vld [vmem:[%s597] sm:$0xf]
      %v599 = vld [vmem:[%s597 + $0x4] sm:$0xf]
      %v600 = vld [vmem:[%s597 + $0x8] sm:$0xf]
      %v601 = vld [vmem:[%s597 + $0xc] sm:$0xf]
      %v602 = vld [vmem:[%s597 + $0x10] sm:$0xf]
      %v603 = vld [vmem:[%s597 + $0x14] sm:$0xf]
      %v604 = vld [vmem:[%s597 + $0x18] sm:$0xf]
      %v605 = vld [vmem:[%s597 + $0x1c] sm:$0xf]
      %v606 = vld [vmem:[%s597 + $0x20] sm:$0xf]
      %v607 = vld [vmem:[%s597 + $0x24] sm:$0xf]
      %v608 = vld [vmem:[%s597 + $0x28] sm:$0xf]
      %v609 = vld [vmem:[%s597 + $0x2c] sm:$0xf]
      %v610 = vld [vmem:[%s597 + $0x30] sm:$0xf]
      %v611 = vld [vmem:[%s597 + $0x34] sm:$0xf]
      %v612 = vld [vmem:[%s597 + $0x38] sm:$0xf]
      %v613 = vld [vmem:[%s597 + $0x3c] sm:$0xf]
      %v615 = vshrl.u32 %v579, 16
      %v617 = vshll.u32 %v579, 16
      %v619 = vrot.slane %v617, 1
      %v620 = vor.u32 %v615, %v619
      %v622 = vshll.u32 %v580, 16
      %v624 = vrot.slane %v622, 1
      %v625 = vsel %vm319, %v620, %v624
      %v643 = vunpack.c.l.b16 %v598
      %v644 = vunpack.c.l.b16 %v599
      %v645 = vunpack.c.l.b16 %v600
      %v646 = vunpack.c.l.b16 %v601
      %v647 = vunpack.c.l.b16 %v602
      %v648 = vunpack.c.l.b16 %v603
      %v649 = vunpack.c.l.b16 %v604
      %v650 = vunpack.c.l.b16 %v605
      %v651 = vunpack.c.l.b16 %v606
      %v652 = vunpack.c.l.b16 %v607
      %v653 = vunpack.c.l.b16 %v608
      %v654 = vunpack.c.l.b16 %v609
      %v655 = vunpack.c.l.b16 %v610
      %v656 = vunpack.c.l.b16 %v611
      %v657 = vunpack.c.l.b16 %v612
      %v658 = vunpack.c.l.b16 %v613
      %v659 = vpack.c.b16 %v644, %v643
      %v660 = vpack.c.b16 %v646, %v645
      %v661 = vpack.c.b16 %v648, %v647
      %v662 = vpack.c.b16 %v650, %v649
      %v663 = vpack.c.b16 %v652, %v651
      %v664 = vpack.c.b16 %v654, %v653
      %v665 = vpack.c.b16 %v656, %v655
      %v666 = vpack.c.b16 %v658, %v657
      %675 = vmatprep.subr.bf16.mxu0 0
      %676 = vmatpush1.bf16.msra.mxu0 %v666
      %677 = vmatprep.subr.bf16.mxu0 0
      %678 = vmatpush1.bf16.msra.mxu0 %v665
      %679 = vmatprep.subr.bf16.mxu0 0
      %680 = vmatpush1.bf16.msra.mxu0 %v664
      %681 = vmatprep.subr.bf16.mxu0 0
      %682 = vmatpush1.bf16.msra.mxu0 %v663
      %683 = vmatprep.subr.bf16.mxu0 0
      %684 = vmatpush1.bf16.msra.mxu0 %v662
      %685 = vmatprep.subr.bf16.mxu0 0
      %686 = vmatpush1.bf16.msra.mxu0 %v661
      %687 = vmatprep.subr.bf16.mxu0 0
      %688 = vmatpush1.bf16.msra.mxu0 %v660
      %689 = vmatprep.subr.bf16.mxu0 0
      %690 = vmatpush1.bf16.msra.mxu0 %v659
      %691 = vmatprep.subr.bf16.mxu0 0
      %692 = vmatpush2.bf16.msra.mxu0 0
      %693 = vmatprep.subr.bf16.mxu0 0
      %694 = vmatpush2.bf16.msra.mxu0 0
      %695 = vmatprep.subr.bf16.mxu0 0
      %696 = vmatpush2.bf16.msra.mxu0 0
      %697 = vmatprep.subr.bf16.mxu0 0
      %698 = vmatpush2.bf16.msra.mxu0 0
      %699 = vmatprep.subr.bf16.mxu0 0
      %700 = vmatpush2.bf16.msra.mxu0 0
      %701 = vmatprep.subr.bf16.mxu0 0
      %702 = vmatpush2.bf16.msra.mxu0 0
      %703 = vmatprep.subr.bf16.mxu0 0
      %704 = vmatpush2.bf16.msra.mxu0 0
      %705 = vmatprep.subr.bf16.mxu0 0
      %706 = vmatpush2.bf16.msra.mxu0 0
      %707 = vmatprep.mubr.bf16.mxu0 0
      %708 = vmatmul.mubr.bf16.gmra.mxu0 %v625
      %v709 = vpop.f32.mrf.mxu0
      %v710 = vadd.f32 0.0, %v709
      %v711 = vpop.f32.mrf.mxu0
      %v712 = vpop.f32.mrf.mxu0
      %v713 = vadd.f32 0.0, %v712
      %v714 = vpop.f32.mrf.mxu0
      %715 = vdwg.mxu0
      %v732 = vunpack.c.l.b16 %v581
      %v733 = vunpack.c.l.b16 %v582
      %v734 = vunpack.c.l.b16 %v583
      %v735 = vunpack.c.l.b16 %v584
      %v736 = vunpack.c.l.b16 %v585
      %v737 = vunpack.c.l.b16 %v586
      %v738 = vunpack.c.l.b16 %v587
      %v739 = vunpack.c.l.b16 %v588
      %v740 = vunpack.c.l.b16 %v589
      %v741 = vunpack.c.l.b16 %v590
      %v742 = vunpack.c.l.b16 %v591
      %v743 = vunpack.c.l.b16 %v592
      %v744 = vunpack.c.l.b16 %v593
      %v745 = vunpack.c.l.b16 %v594
      %v746 = vunpack.c.l.b16 %v595
      %v747 = vunpack.c.l.b16 %v596
      %v748 = vpack.c.b16 %v733, %v732
      %v749 = vpack.c.b16 %v735, %v734
      %v750 = vpack.c.b16 %v737, %v736
      %v751 = vpack.c.b16 %v739, %v738
      %v752 = vpack.c.b16 %v741, %v740
      %v753 = vpack.c.b16 %v743, %v742
      %v754 = vpack.c.b16 %v745, %v744
      %v755 = vpack.c.b16 %v747, %v746
      %764 = vmatprep.subr.bf16.mxu0 0
      %765 = vmatpush1.bf16.msra.mxu0 %v755
      %766 = vmatprep.subr.bf16.mxu0 0
      %767 = vmatpush1.bf16.msra.mxu0 %v754
      %768 = vmatprep.subr.bf16.mxu0 0
      %769 = vmatpush1.bf16.msra.mxu0 %v753
      %770 = vmatprep.subr.bf16.mxu0 0
      %771 = vmatpush1.bf16.msra.mxu0 %v752
      %772 = vmatprep.subr.bf16.mxu0 0
      %773 = vmatpush1.bf16.msra.mxu0 %v751
      %774 = vmatprep.subr.bf16.mxu0 0
      %775 = vmatpush1.bf16.msra.mxu0 %v750
      %776 = vmatprep.subr.bf16.mxu0 0
      %777 = vmatpush1.bf16.msra.mxu0 %v749
      %778 = vmatprep.subr.bf16.mxu0 0
      %779 = vmatpush1.bf16.msra.mxu0 %v748
      %780 = vmatprep.subr.bf16.mxu0 0
      %781 = vmatpush2.bf16.msra.mxu0 0
      %782 = vmatprep.subr.bf16.mxu0 0
      %783 = vmatpush2.bf16.msra.mxu0 0
      %784 = vmatprep.subr.bf16.mxu0 0
      %785 = vmatpush2.bf16.msra.mxu0 0
      %786 = vmatprep.subr.bf16.mxu0 0
      %787 = vmatpush2.bf16.msra.mxu0 0
      %788 = vmatprep.subr.bf16.mxu0 0
      %789 = vmatpush2.bf16.msra.mxu0 0
      %790 = vmatprep.subr.bf16.mxu0 0
      %791 = vmatpush2.bf16.msra.mxu0 0
      %792 = vmatprep.subr.bf16.mxu0 0
      %793 = vmatpush2.bf16.msra.mxu0 0
      %794 = vmatprep.subr.bf16.mxu0 0
      %795 = vmatpush2.bf16.msra.mxu0 0
      %796 = vmatprep.mubr.bf16.mxu0 0
      %797 = vmatmul.mubr.bf16.gmra.mxu0 %v579
      %v798 = vpop.f32.mrf.mxu0
      %v799 = vadd.f32 %v710, %v798
      %v800 = vpop.f32.mrf.mxu0
      %v801 = vpop.f32.mrf.mxu0
      %v802 = vadd.f32 %v713, %v801
      %v803 = vpop.f32.mrf.mxu0
      %804 = vdwg.mxu0
      %s805 = scalar_lea.vmem %s3, 128
      %v806 = vld [vmem:[%s805] sm:$0xf]
      %v807 = vld [vmem:[%s805 + $0x4] sm:$0xf]
      %v808 = vld [vmem:[%s805 + $0x8] sm:$0xf]
      %v809 = vld [vmem:[%s805 + $0xc] sm:$0xf]
      %v810 = vld [vmem:[%s805 + $0x10] sm:$0xf]
      %v811 = vld [vmem:[%s805 + $0x14] sm:$0xf]
      %v812 = vld [vmem:[%s805 + $0x18] sm:$0xf]
      %v813 = vld [vmem:[%s805 + $0x1c] sm:$0xf]
      %v814 = vld [vmem:[%s805 + $0x20] sm:$0xf]
      %v815 = vld [vmem:[%s805 + $0x24] sm:$0xf]
      %v816 = vld [vmem:[%s805 + $0x28] sm:$0xf]
      %v817 = vld [vmem:[%s805 + $0x2c] sm:$0xf]
      %v818 = vld [vmem:[%s805 + $0x30] sm:$0xf]
      %v819 = vld [vmem:[%s805 + $0x34] sm:$0xf]
      %v820 = vld [vmem:[%s805 + $0x38] sm:$0xf]
      %v821 = vld [vmem:[%s805 + $0x3c] sm:$0xf]
      %v824 = vrot.slane %v579, 1
      %v825 = vrot.slane %v580, 1
      %v826 = vsel %vm477, %v824, %v825
      %v844 = vunpack.c.l.b16 %v806
      %v845 = vunpack.c.l.b16 %v807
      %v846 = vunpack.c.l.b16 %v808
      %v847 = vunpack.c.l.b16 %v809
      %v848 = vunpack.c.l.b16 %v810
      %v849 = vunpack.c.l.b16 %v811
      %v850 = vunpack.c.l.b16 %v812
      %v851 = vunpack.c.l.b16 %v813
      %v852 = vunpack.c.l.b16 %v814
      %v853 = vunpack.c.l.b16 %v815
      %v854 = vunpack.c.l.b16 %v816
      %v855 = vunpack.c.l.b16 %v817
      %v856 = vunpack.c.l.b16 %v818
      %v857 = vunpack.c.l.b16 %v819
      %v858 = vunpack.c.l.b16 %v820
      %v859 = vunpack.c.l.b16 %v821
      %v860 = vpack.c.b16 %v845, %v844
      %v861 = vpack.c.b16 %v847, %v846
      %v862 = vpack.c.b16 %v849, %v848
      %v863 = vpack.c.b16 %v851, %v850
      %v864 = vpack.c.b16 %v853, %v852
      %v865 = vpack.c.b16 %v855, %v854
      %v866 = vpack.c.b16 %v857, %v856
      %v867 = vpack.c.b16 %v859, %v858
      %876 = vmatprep.subr.bf16.mxu0 0
      %877 = vmatpush1.bf16.msra.mxu0 %v867
      %878 = vmatprep.subr.bf16.mxu0 0
      %879 = vmatpush1.bf16.msra.mxu0 %v866
      %880 = vmatprep.subr.bf16.mxu0 0
      %881 = vmatpush1.bf16.msra.mxu0 %v865
      %882 = vmatprep.subr.bf16.mxu0 0
      %883 = vmatpush1.bf16.msra.mxu0 %v864
      %884 = vmatprep.subr.bf16.mxu0 0
      %885 = vmatpush1.bf16.msra.mxu0 %v863
      %886 = vmatprep.subr.bf16.mxu0 0
      %887 = vmatpush1.bf16.msra.mxu0 %v862
      %888 = vmatprep.subr.bf16.mxu0 0
      %889 = vmatpush1.bf16.msra.mxu0 %v861
      %890 = vmatprep.subr.bf16.mxu0 0
      %891 = vmatpush1.bf16.msra.mxu0 %v860
      %892 = vmatprep.subr.bf16.mxu0 0
      %893 = vmatpush2.bf16.msra.mxu0 0
      %894 = vmatprep.subr.bf16.mxu0 0
      %895 = vmatpush2.bf16.msra.mxu0 0
      %896 = vmatprep.subr.bf16.mxu0 0
      %897 = vmatpush2.bf16.msra.mxu0 0
      %898 = vmatprep.subr.bf16.mxu0 0
      %899 = vmatpush2.bf16.msra.mxu0 0
      %900 = vmatprep.subr.bf16.mxu0 0
      %901 = vmatpush2.bf16.msra.mxu0 0
      %902 = vmatprep.subr.bf16.mxu0 0
      %903 = vmatpush2.bf16.msra.mxu0 0
      %904 = vmatprep.subr.bf16.mxu0 0
      %905 = vmatpush2.bf16.msra.mxu0 0
      %906 = vmatprep.subr.bf16.mxu0 0
      %907 = vmatpush2.bf16.msra.mxu0 0
      %908 = vmatprep.mubr.bf16.mxu0 0
      %909 = vmatmul.mubr.bf16.gmra.mxu0 %v826
      %v910 = vpop.f32.mrf.mxu0
      %v911 = vadd.f32 0.0, %v910
      %v912 = vpop.f32.mrf.mxu0
      %v913 = vpop.f32.mrf.mxu0
      %v914 = vadd.f32 0.0, %v913
      %v915 = vpop.f32.mrf.mxu0
      %916 = vdwg.mxu0
      %v917 = vadd.f32 %v799, %v911
      %v918 = vadd.f32 %v802, %v914
      %v919 = vld [vmem:[%s4] sm:$0x1]
      %v921 = vlaneseq
      %v922 = vshrl.u32 %v921, 7
      %v923 = vsub.s32 0, %v922
      %v924 = vrot.slane %v919, %v923
      %v926 = vadd.f32 %v917, %v924
      %v927 = vadd.f32 %v918, %v924
      %vm928 = vcmp.gt.f32.partialorder %v926, 0.0
      %vm929 = vcmp.gt.f32.partialorder %v927, 0.0
      %v930 = vmul.f32 %v926, 0.01
      %v931 = vmul.f32 %v927, 0.01
      %v932 = vsel %vm928, %v926, %v930
      %v933 = vsel %vm929, %v927, %v931
      %934 = vst [vmem:[%s285] sm:$0xff] %v932
      %935 = vst [vmem:[%s285 + $0x8] sm:$0xff] %v933
      %v938 = vcombine.high %v932, %v932
      %v940 = vunpack.c.l.s4 1983009808
      %v941 = vunpack.c.0.s8 %v940
      %v942 = vlaneseq
      %v943 = vshrl.u32 %v942, 7
      %v944 = vsub.s32 %v941, %v943
      %v945 = vrot.slane %v932, %v944
      %v947 = vunpack.c.l.s4 1983009808
      %v948 = vunpack.c.0.s8 %v947
      %v949 = vlaneseq
      %v950 = vshrl.u32 %v949, 7
      %v951 = vsub.s32 %v948, %v950
      %v952 = vrot.slane %v938, %v951
      %v953 = vcombine.high %v945, %v945
      %v954 = vcombine.high %v952, %v952
      %v955 = vcombine.high %v933, %v933
      %v957 = vunpack.c.l.s4 1983009808
      %v958 = vunpack.c.0.s8 %v957
      %v959 = vlaneseq
      %v960 = vshrl.u32 %v959, 7
      %v961 = vsub.s32 %v958, %v960
      %v962 = vrot.slane %v933, %v961
      %v964 = vunpack.c.l.s4 1983009808
      %v965 = vunpack.c.0.s8 %v964
      %v966 = vlaneseq
      %v967 = vshrl.u32 %v966, 7
      %v968 = vsub.s32 %v965, %v967
      %v969 = vrot.slane %v955, %v968
      %v970 = vcombine.high %v962, %v962
      %v971 = vcombine.high %v969, %v969
      %vm980 = vcmask 1041408
      %v981 = vsel %vm980, %v945, -inf
      %v982 = vrot.slane %v981, 4
      %v983 = vmax.f32 %v981, %v982
      %v984 = vrot.slane %v983, 2
      %v985 = vmax.f32 %v983, %v984
      %v986 = vrot.slane %v985, 1
      %v987 = vmax.f32 %v985, %v986
      %v988 = vsel %vm980, %v953, -inf
      %v989 = vrot.slane %v988, 4
      %v990 = vmax.f32 %v988, %v989
      %v991 = vrot.slane %v990, 2
      %v992 = vmax.f32 %v990, %v991
      %v993 = vrot.slane %v992, 1
      %v994 = vmax.f32 %v992, %v993
      %v995 = vsel %vm980, %v952, -inf
      %v996 = vrot.slane %v995, 4
      %v997 = vmax.f32 %v995, %v996
      %v998 = vrot.slane %v997, 2
      %v999 = vmax.f32 %v997, %v998
      %v1000 = vrot.slane %v999, 1
      %v1001 = vmax.f32 %v999, %v1000
      %v1002 = vsel %vm980, %v954, -inf
      %v1003 = vrot.slane %v1002, 4
      %v1004 = vmax.f32 %v1002, %v1003
      %v1005 = vrot.slane %v1004, 2
      %v1006 = vmax.f32 %v1004, %v1005
      %v1007 = vrot.slane %v1006, 1
      %v1008 = vmax.f32 %v1006, %v1007
      %v1009 = vsel %vm980, %v962, -inf
      %v1010 = vrot.slane %v1009, 4
      %v1011 = vmax.f32 %v1009, %v1010
      %v1012 = vrot.slane %v1011, 2
      %v1013 = vmax.f32 %v1011, %v1012
      %v1014 = vrot.slane %v1013, 1
      %v1015 = vmax.f32 %v1013, %v1014
      %v1016 = vsel %vm980, %v970, -inf
      %v1017 = vrot.slane %v1016, 4
      %v1018 = vmax.f32 %v1016, %v1017
      %v1019 = vrot.slane %v1018, 2
      %v1020 = vmax.f32 %v1018, %v1019
      %v1021 = vrot.slane %v1020, 1
      %v1022 = vmax.f32 %v1020, %v1021
      %v1023 = vsel %vm980, %v969, -inf
      %v1024 = vrot.slane %v1023, 4
      %v1025 = vmax.f32 %v1023, %v1024
      %v1026 = vrot.slane %v1025, 2
      %v1027 = vmax.f32 %v1025, %v1026
      %v1028 = vrot.slane %v1027, 1
      %v1029 = vmax.f32 %v1027, %v1028
      %v1030 = vsel %vm980, %v971, -inf
      %v1031 = vrot.slane %v1030, 4
      %v1032 = vmax.f32 %v1030, %v1031
      %v1033 = vrot.slane %v1032, 2
      %v1034 = vmax.f32 %v1032, %v1033
      %v1035 = vrot.slane %v1034, 1
      %v1036 = vmax.f32 %v1034, %v1035
      %v1037 = vpack.c.bf16 %v987, %v987
      %v1038 = vpack.c.bf16 %v994, %v994
      %v1039 = vpack.c.bf16 %v1001, %v1001
      %v1040 = vpack.c.bf16 %v1008, %v1008
      %v1041 = vpack.c.bf16 %v1015, %v1015
      %v1042 = vpack.c.bf16 %v1022, %v1022
      %v1043 = vpack.c.bf16 %v1029, %v1029
      %v1044 = vpack.c.bf16 %v1036, %v1036
      %v1045 = vld [vmem:[%s5] sm:$0xf]
      %v1046 = vld [vmem:[%s5 + $0x4] sm:$0xf]
      %v1047 = vld [vmem:[%s5 + $0x8] sm:$0xf]
      %v1048 = vld [vmem:[%s5 + $0xc] sm:$0xf]
      %v1049 = vld [vmem:[%s5 + $0x10] sm:$0xf]
      %v1050 = vld [vmem:[%s5 + $0x14] sm:$0xf]
      %v1051 = vld [vmem:[%s5 + $0x18] sm:$0xf]
      %v1052 = vld [vmem:[%s5 + $0x1c] sm:$0xf]
      %v1053 = vld [vmem:[%s5 + $0x20] sm:$0xf]
      %v1054 = vld [vmem:[%s5 + $0x24] sm:$0xf]
      %v1055 = vld [vmem:[%s5 + $0x28] sm:$0xf]
      %v1056 = vld [vmem:[%s5 + $0x2c] sm:$0xf]
      %v1057 = vld [vmem:[%s5 + $0x30] sm:$0xf]
      %v1058 = vld [vmem:[%s5 + $0x34] sm:$0xf]
      %v1059 = vld [vmem:[%s5 + $0x38] sm:$0xf]
      %v1060 = vld [vmem:[%s5 + $0x3c] sm:$0xf]
      %v1069 = vunpack.c.l.b16 %v1037
      %v1070 = vunpack.c.l.b16 %v1038
      %v1071 = vunpack.c.l.b16 %v1039
      %v1072 = vunpack.c.l.b16 %v1040
      %v1073 = vunpack.c.l.b16 %v1041
      %v1074 = vunpack.c.l.b16 %v1042
      %v1075 = vunpack.c.l.b16 %v1043
      %v1076 = vunpack.c.l.b16 %v1044
      %vm1077 = vcmask 1041409
      %v1078 = vsel %vm1077, %v1070, %v1069
      %vm1079 = vcmask 1042434
      %v1080 = vsel %vm1079, %v1071, %v1078
      %vm1081 = vcmask 1043459
      %v1082 = vsel %vm1081, %v1072, %v1080
      %vm1083 = vcmask 1044484
      %v1084 = vsel %vm1083, %v1073, %v1082
      %vm1085 = vcmask 1045509
      %v1086 = vsel %vm1085, %v1074, %v1084
      %vm1087 = vcmask 1046534
      %v1088 = vsel %vm1087, %v1075, %v1086
      %vm1089 = vcmask 1047559
      %v1090 = vsel %vm1089, %v1076, %v1088
      %v1091 = vpack.c.b16 %v1090, %v1090
      %v1109 = vunpack.c.l.b16 %v1045
      %v1110 = vunpack.c.l.b16 %v1046
      %v1111 = vunpack.c.l.b16 %v1047
      %v1112 = vunpack.c.l.b16 %v1048
      %v1113 = vunpack.c.l.b16 %v1049
      %v1114 = vunpack.c.l.b16 %v1050
      %v1115 = vunpack.c.l.b16 %v1051
      %v1116 = vunpack.c.l.b16 %v1052
      %v1117 = vunpack.c.l.b16 %v1053
      %v1118 = vunpack.c.l.b16 %v1054
      %v1119 = vunpack.c.l.b16 %v1055
      %v1120 = vunpack.c.l.b16 %v1056
      %v1121 = vunpack.c.l.b16 %v1057
      %v1122 = vunpack.c.l.b16 %v1058
      %v1123 = vunpack.c.l.b16 %v1059
      %v1124 = vunpack.c.l.b16 %v1060
      %v1125 = vpack.c.b16 %v1110, %v1109
      %v1126 = vpack.c.b16 %v1112, %v1111
      %v1127 = vpack.c.b16 %v1114, %v1113
      %v1128 = vpack.c.b16 %v1116, %v1115
      %v1129 = vpack.c.b16 %v1118, %v1117
      %v1130 = vpack.c.b16 %v1120, %v1119
      %v1131 = vpack.c.b16 %v1122, %v1121
      %v1132 = vpack.c.b16 %v1124, %v1123
      %1141 = vmatprep.subr.bf16.mxu0 0
      %1142 = vmatpush1.bf16.msra.mxu0 %v1132
      %1143 = vmatprep.subr.bf16.mxu0 0
      %1144 = vmatpush1.bf16.msra.mxu0 %v1131
      %1145 = vmatprep.subr.bf16.mxu0 0
      %1146 = vmatpush1.bf16.msra.mxu0 %v1130
      %1147 = vmatprep.subr.bf16.mxu0 0
      %1148 = vmatpush1.bf16.msra.mxu0 %v1129
      %1149 = vmatprep.subr.bf16.mxu0 0
      %1150 = vmatpush1.bf16.msra.mxu0 %v1128
      %1151 = vmatprep.subr.bf16.mxu0 0
      %1152 = vmatpush1.bf16.msra.mxu0 %v1127
      %1153 = vmatprep.subr.bf16.mxu0 0
      %1154 = vmatpush1.bf16.msra.mxu0 %v1126
      %1155 = vmatprep.subr.bf16.mxu0 0
      %1156 = vmatpush1.bf16.msra.mxu0 %v1125
      %1157 = vmatprep.subr.bf16.mxu0 0
      %1158 = vmatpush2.bf16.msra.mxu0 0
      %1159 = vmatprep.subr.bf16.mxu0 0
      %1160 = vmatpush2.bf16.msra.mxu0 0
      %1161 = vmatprep.subr.bf16.mxu0 0
      %1162 = vmatpush2.bf16.msra.mxu0 0
      %1163 = vmatprep.subr.bf16.mxu0 0
      %1164 = vmatpush2.bf16.msra.mxu0 0
      %1165 = vmatprep.subr.bf16.mxu0 0
      %1166 = vmatpush2.bf16.msra.mxu0 0
      %1167 = vmatprep.subr.bf16.mxu0 0
      %1168 = vmatpush2.bf16.msra.mxu0 0
      %1169 = vmatprep.subr.bf16.mxu0 0
      %1170 = vmatpush2.bf16.msra.mxu0 0
      %1171 = vmatprep.subr.bf16.mxu0 0
      %1172 = vmatpush2.bf16.msra.mxu0 0
      %1173 = vmatprep.mubr.bf16.mxu0 0
      %1174 = vmatmul.mubr.bf16.gmra.mxu0 %v1091
      %v1175 = vpop.f32.mrf.mxu0
      %v1176 = vadd.f32 0.0, %v1175
      %v1177 = vpop.f32.mrf.mxu0
      %v1178 = vpop.f32.mrf.mxu0
      %v1179 = vpop.f32.mrf.mxu0
      %1180 = vdwg.mxu0
      %s1181 = scalar_lea.vmem %s5, 64
      %v1182 = vld [vmem:[%s1181] sm:$0xf]
      %v1183 = vld [vmem:[%s1181 + $0x4] sm:$0xf]
      %v1184 = vld [vmem:[%s1181 + $0x8] sm:$0xf]
      %v1185 = vld [vmem:[%s1181 + $0xc] sm:$0xf]
      %v1186 = vld [vmem:[%s1181 + $0x10] sm:$0xf]
      %v1187 = vld [vmem:[%s1181 + $0x14] sm:$0xf]
      %v1188 = vld [vmem:[%s1181 + $0x18] sm:$0xf]
      %v1189 = vld [vmem:[%s1181 + $0x1c] sm:$0xf]
      %v1190 = vld [vmem:[%s1181 + $0x20] sm:$0xf]
      %v1191 = vld [vmem:[%s1181 + $0x24] sm:$0xf]
      %v1192 = vld [vmem:[%s1181 + $0x28] sm:$0xf]
      %v1193 = vld [vmem:[%s1181 + $0x2c] sm:$0xf]
      %v1194 = vld [vmem:[%s1181 + $0x30] sm:$0xf]
      %v1195 = vld [vmem:[%s1181 + $0x34] sm:$0xf]
      %v1196 = vld [vmem:[%s1181 + $0x38] sm:$0xf]
      %v1197 = vld [vmem:[%s1181 + $0x3c] sm:$0xf]
      %v1214 = vunpack.c.l.b16 %v1182
      %v1215 = vunpack.c.l.b16 %v1183
      %v1216 = vunpack.c.l.b16 %v1184
      %v1217 = vunpack.c.l.b16 %v1185
      %v1218 = vunpack.c.l.b16 %v1186
      %v1219 = vunpack.c.l.b16 %v1187
      %v1220 = vunpack.c.l.b16 %v1188
      %v1221 = vunpack.c.l.b16 %v1189
      %v1222 = vunpack.c.l.b16 %v1190
      %v1223 = vunpack.c.l.b16 %v1191
      %v1224 = vunpack.c.l.b16 %v1192
      %v1225 = vunpack.c.l.b16 %v1193
      %v1226 = vunpack.c.l.b16 %v1194
      %v1227 = vunpack.c.l.b16 %v1195
      %v1228 = vunpack.c.l.b16 %v1196
      %v1229 = vunpack.c.l.b16 %v1197
      %v1230 = vpack.c.b16 %v1215, %v1214
      %v1231 = vpack.c.b16 %v1217, %v1216
      %v1232 = vpack.c.b16 %v1219, %v1218
      %v1233 = vpack.c.b16 %v1221, %v1220
      %v1234 = vpack.c.b16 %v1223, %v1222
      %v1235 = vpack.c.b16 %v1225, %v1224
      %v1236 = vpack.c.b16 %v1227, %v1226
      %v1237 = vpack.c.b16 %v1229, %v1228
      %1246 = vmatprep.subr.bf16.mxu0 0
      %1247 = vmatpush1.bf16.msra.mxu0 %v1237
      %1248 = vmatprep.subr.bf16.mxu0 0
      %1249 = vmatpush1.bf16.msra.mxu0 %v1236
      %1250 = vmatprep.subr.bf16.mxu0 0
      %1251 = vmatpush1.bf16.msra.mxu0 %v1235
      %1252 = vmatprep.subr.bf16.mxu0 0
      %1253 = vmatpush1.bf16.msra.mxu0 %v1234
      %1254 = vmatprep.subr.bf16.mxu0 0
      %1255 = vmatpush1.bf16.msra.mxu0 %v1233
      %1256 = vmatprep.subr.bf16.mxu0 0
      %1257 = vmatpush1.bf16.msra.mxu0 %v1232
      %1258 = vmatprep.subr.bf16.mxu0 0
      %1259 = vmatpush1.bf16.msra.mxu0 %v1231
      %1260 = vmatprep.subr.bf16.mxu0 0
      %1261 = vmatpush1.bf16.msra.mxu0 %v1230
      %1262 = vmatprep.subr.bf16.mxu0 0
      %1263 = vmatpush2.bf16.msra.mxu0 0
      %1264 = vmatprep.subr.bf16.mxu0 0
      %1265 = vmatpush2.bf16.msra.mxu0 0
      %1266 = vmatprep.subr.bf16.mxu0 0
      %1267 = vmatpush2.bf16.msra.mxu0 0
      %1268 = vmatprep.subr.bf16.mxu0 0
      %1269 = vmatpush2.bf16.msra.mxu0 0
      %1270 = vmatprep.subr.bf16.mxu0 0
      %1271 = vmatpush2.bf16.msra.mxu0 0
      %1272 = vmatprep.subr.bf16.mxu0 0
      %1273 = vmatpush2.bf16.msra.mxu0 0
      %1274 = vmatprep.subr.bf16.mxu0 0
      %1275 = vmatpush2.bf16.msra.mxu0 0
      %1276 = vmatprep.subr.bf16.mxu0 0
      %1277 = vmatpush2.bf16.msra.mxu0 0
      %1278 = vmatprep.mubr.bf16.mxu0 0
      %1279 = vmatmul.mubr.bf16.gmra.mxu0 %v1091
      %v1280 = vpop.f32.mrf.mxu0
      %v1281 = vadd.f32 0.0, %v1280
      %v1282 = vpop.f32.mrf.mxu0
      %v1283 = vpop.f32.mrf.mxu0
      %v1284 = vpop.f32.mrf.mxu0
      %1285 = vdwg.mxu0
      %v1286 = vmax.f32 %v1176, %v1281
      %1287 = vst.msk [vmem:[%s289] sm:$0xff] %vm356, %v1286
      %p1288 = scmp.lt.s32.totalorder %s19, 1
      %s1289 = scalar_select %p1288, %s19, 1
      %s1290 = smul.addr %s1289, 2
      %s1291 = smul.addr %s1290, 8
      %s1292 = scalar_lea.vmem %s6, %s1291
      %p1293 = scmp.lt.s32.totalorder %s19, 1
      %s1294 = scalar_select %p1293, %s19, 1
      %s1295 = smul.addr %s1294, 8
      %s1296 = scalar_lea.vmem %s7, %s1295
      // Predicated region
      $region45: #{down_pallas.1} parent=43 // pred_check
        %p1297 = pneg %p168
      $region46: #{down_pallas.1} parent=43 // pred_check_branch
        %1299 = sbr.rel (%p1297) target = $region48
      $region47: #{down_pallas.1} parent=43 // pred_region
        _
      $region48: #{down_pallas.1} parent=43 // pred_fallthru
        _
      // Predicated region
      $region49: #{down_pallas.1} parent=43 // pred_check
        %p1300 = pneg %p194
      $region50: #{down_pallas.1} parent=43 // pred_check_branch
        %1302 = sbr.rel (%p1300) target = $region52
      $region51: #{down_pallas.1} parent=43 // pred_region
        _
      $region52: #{down_pallas.1} parent=43 // pred_fallthru
        _
    $region44: #{down_pallas.1} parent=5 // pred_fallthru
      _
    %p1303 = scmp.le.s32.totalorder 2, %s14
    // Predicated region
    $region53: #{down_pallas.1} parent=5 // pred_check
      %p1304 = pneg %p1303
    $region54: #{down_pallas.1} parent=5 // pred_check_branch
      %1306 = sbr.rel (%p1304) target = $region56
    $region55: #{down_pallas.1} parent=5 // pred_region
      %s1307 = ssub.s32 %s14, 2
      // Predicated region
      $region57: #{down_pallas.1} parent=55 // pred_check
        %p1308 = pneg %p174
      $region58: #{down_pallas.1} parent=55 // pred_check_branch
        %1310 = sbr.rel (%p1308) target = $region60
      $region59: #{down_pallas.1} parent=55 // pred_region
        %p1311 = scmp.lt.s32.totalorder %s20, 1
        %s1312 = scalar_select %p1311, %s20, 1
        %s1313 = smul.addr %s1312, 2
        %s1314 = smul.addr %s1313, 8
        %s1315 = scalar_lea.vmem %s6, %s1314
      $region60: #{down_pallas.1} parent=55 // pred_fallthru
        _
      // Predicated region
      $region61: #{down_pallas.1} parent=55 // pred_check
        %p1316 = pneg %p200
      $region62: #{down_pallas.1} parent=55 // pred_check_branch
        %1318 = sbr.rel (%p1316) target = $region64
      $region63: #{down_pallas.1} parent=55 // pred_region
        %p1319 = scmp.lt.s32.totalorder %s20, 1
        %s1320 = scalar_select %p1319, %s20, 1
        %s1321 = smul.addr %s1320, 8
        %s1322 = scalar_lea.vmem %s7, %s1321
      $region64: #{down_pallas.1} parent=55 // pred_fallthru
        _
    $region56: #{down_pallas.1} parent=5 // pred_fallthru
      _
  $region6: #{down_pallas.1} parent=0 // loop_footer
    %s18 = sadd.s32 1, %s14
  $region7: #{down_pallas.1} parent=0 // loop_footer_branch
    %13 = sbr.rel target = $region3
  $region8: #{down_pallas.1} parent=0 // loop_exit
    _

</llo_original>
